<compile_context>
chip_gen: v5e
topology: v5e:2x2
jax: 0.10.0
libtpu: 0.0.40
codegen_flags: <defaults>
</compile_context>

<pallas_src>
import jax
import jax.numpy as jnp
from jax.experimental import pallas as pl

# Problem sizes (small, consistent with the module)
T, B, C = 8, 2, 32          # seq_len, batch, encoder_embed_dim
H = 4                       # encoder_attention_heads
Dh = C // H                 # head dim
FFN = 64                    # encoder_ffn_embed_dim
N = T * B                   # total tokens (flat t-major, b-minor layout)
EPS = 1e-5                  # nn.LayerNorm default eps
SCALE = Dh ** -0.5          # fairseq MultiheadAttention q scaling
NEG = -1e30                 # finite "masked" bias (avoids -inf -> NaN)

# ---- row layout of the packed `mats` slab (width 64 lanes) ----
MAT_W = FFN                       # 64
R_WO = 0                          # rows   0.. 31 : wo.T  (C, C)   lanes 0:32
R_W1 = C                          # rows  32.. 63 : w1.T  (C, FFN) lanes 0:64
R_W2 = 2 * C                      # rows  64..127 : w2.T  (FFN, C) lanes 0:32
R_QKVB = 2 * C + FFN              # rows 128..139 : qkv per-head bias, lanes 0:8
R_BO = R_QKVB + 3 * H             # 140 : out_proj bias      lanes 0:32
R_LN1G = R_BO + 1                 # 141 : self_attn LN gamma
R_LN1B = R_BO + 2                 # 142 : self_attn LN beta
R_B1 = R_BO + 3                   # 143 : fc1 bias           lanes 0:64
R_B2 = R_BO + 4                   # 144 : fc2 bias           lanes 0:32
R_LN2G = R_BO + 5                 # 145 : final LN gamma
R_LN2B = R_BO + 6                 # 146 : final LN beta
MAT_ROWS = ((R_LN2B + 1 + 7) // 8) * 8    # 152 (sublane-aligned)


def _layer_norm(x, g, b):
    mu = jnp.mean(x, axis=-1, keepdims=True)
    var = jnp.mean((x - mu) ** 2, axis=-1, keepdims=True)
    return (x - mu) * jax.lax.rsqrt(var + EPS) * g + b


def encoder_layer_kernel(x_ref, pad_ref, attn_w_ref, mats_ref, o_ref):
    x = x_ref[...]                                           # (N, C) f32

    # ---- additive attention-mask bias, built in-kernel (VPU only) ----
    # token n <-> (t = n // B, b = n % B); mask cross-batch pairs and padded keys.
    qb = jax.lax.broadcasted_iota(jnp.int32, (N, N), 0) % B
    kb = jax.lax.broadcasted_iota(jnp.int32, (N, N), 1) % B
    pad = pad_ref[...]                                       # (1, N), 1.0 at pad
    valid = (qb == kb) & (pad < 0.5)
    mask_bias = jnp.where(valid, 0.0, NEG)                   # (N, N) f32

    # ---- self attention: per-head, zero relayouts (static unroll, H=4) ----
    attn = jnp.zeros((N, C), jnp.float32)
    for h in range(H):
        wq = attn_w_ref[0, h]                                # (C, Dh), SCALE folded
        wk = attn_w_ref[1, h]
        wv = attn_w_ref[2, h]
        bq = mats_ref[R_QKVB + h:R_QKVB + h + 1, :Dh]        # (1, Dh)
        bk = mats_ref[R_QKVB + H + h:R_QKVB + H + h + 1, :Dh]
        bv = mats_ref[R_QKVB + 2 * H + h:R_QKVB + 2 * H + h + 1, :Dh]

        qh = jnp.dot(x, wq, preferred_element_type=jnp.float32) + bq   # (N, Dh)
        kh = jnp.dot(x, wk, preferred_element_type=jnp.float32) + bk
        vh = jnp.dot(x, wv, preferred_element_type=jnp.float32) + bv

        # scores: contract Dh of both operands (A @ B^T form, MXU-native)
        s = jax.lax.dot_general(qh, kh, (((1,), (1,)), ((), ())),
                                preferred_element_type=jnp.float32)    # (N, N)
        s = s + mask_bias
        s = s - jnp.max(s, axis=-1, keepdims=True)
        p = jnp.exp(s)
        p = p / jnp.sum(p, axis=-1, keepdims=True)           # exact divide

        ctx = jnp.dot(p, vh, preferred_element_type=jnp.float32)       # (N, Dh)
        wo_h = mats_ref[R_WO + h * Dh:R_WO + (h + 1) * Dh, :C]          # (Dh, C)
        attn = attn + jnp.dot(ctx, wo_h, preferred_element_type=jnp.float32)

    attn = attn + mats_ref[R_BO:R_BO + 1, :C]

    # dropout (identity) -> add residual -> post-norm layernorm
    x = _layer_norm(x + attn,
                    mats_ref[R_LN1G:R_LN1G + 1, :C],
                    mats_ref[R_LN1B:R_LN1B + 1, :C])

    # ---- feed-forward ----
    r = x
    h1 = jnp.dot(x, mats_ref[R_W1:R_W1 + C, :FFN],
                 preferred_element_type=jnp.float32) + mats_ref[R_B1:R_B1 + 1, :FFN]
    h1 = jnp.maximum(h1, 0.0)
    h2 = jnp.dot(h1, mats_ref[R_W2:R_W2 + FFN, :C],
                 preferred_element_type=jnp.float32) + mats_ref[R_B2:R_B2 + 1, :C]
    x = _layer_norm(r + h2,
                    mats_ref[R_LN2G:R_LN2G + 1, :C],
                    mats_ref[R_LN2B:R_LN2B + 1, :C])

    o_ref[...] = x


def prepare_params(params):
    """One-time host-side packing of PyTorch-layout params into two f32 slabs."""
    (wqkv, bqkv, wo, bo, ln1g, ln1b, w1, b1, w2, b2, ln2g, ln2b) = params
    wq, wk, wv = wqkv[:C], wqkv[C:2 * C], wqkv[2 * C:]       # (C_out, C_in)
    bq, bk, bv = bqkv[:C], bqkv[C:2 * C], bqkv[2 * C:]

    def heads_in_major(w):                                   # (C_out, C_in) -> (H, C_in, Dh)
        return jnp.transpose(w.T.reshape(C, H, Dh), (1, 0, 2))

    attn_w = jnp.stack([heads_in_major(wq) * SCALE,          # SCALE folded into q
                        heads_in_major(wk),
                        heads_in_major(wv)], axis=0).astype(jnp.float32)

    mats = jnp.zeros((MAT_ROWS, MAT_W), jnp.float32)
    mats = mats.at[R_WO:R_WO + C, :C].set(wo.T)
    mats = mats.at[R_W1:R_W1 + C, :FFN].set(w1.T)
    mats = mats.at[R_W2:R_W2 + FFN, :C].set(w2.T)
    qkvb = jnp.stack([bq * SCALE, bk, bv], axis=0).reshape(3 * H, Dh)
    mats = mats.at[R_QKVB:R_QKVB + 3 * H, :Dh].set(qkvb)
    mats = mats.at[R_BO, :C].set(bo)
    mats = mats.at[R_LN1G, :C].set(ln1g)
    mats = mats.at[R_LN1B, :C].set(ln1b)
    mats = mats.at[R_B1, :FFN].set(b1)
    mats = mats.at[R_B2, :C].set(b2)
    mats = mats.at[R_LN2G, :C].set(ln2g)
    mats = mats.at[R_LN2B, :C].set(ln2b)
    return attn_w, mats


@jax.jit
def transformer_encoder_layer(x_tbc, encoder_padding_mask, packed):
    """x_tbc: (T, B, C) f32; encoder_padding_mask: (B, T) with 1.0 at pad;
    packed: output of prepare_params (prepared once, reused every call)."""
    attn_w, mats = packed
    # (T, B, C) -> (T*B, C): pure row-major reshape, no transpose.
    x2d = x_tbc.reshape(N, C).astype(jnp.float32)
    # flat key-pad vector over tokens (t-major, b-minor), 1.0 at padded keys
    key_pad = encoder_padding_mask.astype(jnp.float32).T.reshape(1, N)

    out2d = pl.pallas_call(
        encoder_layer_kernel,
        out_shape=jax.ShapeDtypeStruct((N, C), jnp.float32),
    )(x2d, key_pad, attn_w, mats)
    return out2d.reshape(T, B, C)


def reference(x_tbc, pad_mask, params):
    (wqkv, bqkv, wo, bo, ln1g, ln1b, w1, b1, w2, b2, ln2g, ln2b) = params
    hi = jax.lax.Precision.HIGHEST
    x = x_tbc                                                 # (T, B, C)
    qkv = jnp.einsum('tbc,dc->tbd', x, wqkv, precision=hi) + bqkv
    q = (qkv[..., :C] * SCALE).reshape(T, B, H, Dh)
    k = qkv[..., C:2 * C].reshape(T, B, H, Dh)
    v = qkv[..., 2 * C:].reshape(T, B, H, Dh)
    s = jnp.einsum('qbhd,kbhd->bhqk', q, k, precision=hi)
    s = jnp.where(pad_mask[:, None, None, :] > 0.5, -jnp.inf, s)
    p = jax.nn.softmax(s, axis=-1)
    a = jnp.einsum('bhqk,kbhd->qbhd', p, v, precision=hi).reshape(T, B, C)
    a = jnp.einsum('tbc,dc->tbd', a, wo, precision=hi) + bo
    x = _layer_norm(x + a, ln1g, ln1b)
    r = x
    h1 = jax.nn.relu(jnp.einsum('tbc,fc->tbf', x, w1, precision=hi) + b1)
    h2 = jnp.einsum('tbf,cf->tbc', h1, w2, precision=hi) + b2
    x = _layer_norm(r + h2, ln2g, ln2b)
    return x


def xavier_uniform(key, shape):
    fan_out, fan_in = shape
    bound = (6.0 / (fan_in + fan_out)) ** 0.5
    return jax.random.uniform(key, shape, jnp.float32, -bound, bound)


if __name__ == "__main__":
    key = jax.random.PRNGKey(0)
    k_qkv, k_o, k_fc1, k_fc2, k_x = jax.random.split(key, 5)

    # PyTorch (out_features, in_features) parameter layout; xavier_uniform
    # weights, zero biases, unit/zero layernorm params.
    params = (
        xavier_uniform(k_qkv, (3 * C, C)),          # in_proj_weight
        jnp.zeros((3 * C,), jnp.float32),           # in_proj_bias
        xavier_uniform(k_o, (C, C)),                # out_proj.weight
        jnp.zeros((C,), jnp.float32),               # out_proj.bias
        jnp.ones((C,), jnp.float32),                # self_attn_layer_norm.weight
        jnp.zeros((C,), jnp.float32),               # self_attn_layer_norm.bias
        xavier_uniform(k_fc1, (FFN, C)),            # fc1.weight
        jnp.zeros((FFN,), jnp.float32),             # fc1.bias
        xavier_uniform(k_fc2, (C, FFN)),            # fc2.weight
        jnp.zeros((C,), jnp.float32),               # fc2.bias
        jnp.ones((C,), jnp.float32),                # final_layer_norm.weight
        jnp.zeros((C,), jnp.float32),               # final_layer_norm.bias
    )
    packed = prepare_params(params)                 # one-time prep (hoisted)

    x = jax.random.normal(k_x, (T, B, C), jnp.float32)       # (seq, batch, embed)
    pad_mask = jnp.zeros((B, T), jnp.float32).at[0, -2:].set(1.0).at[1, -3:].set(1.0)

    out = transformer_encoder_layer(x, pad_mask, packed)
    out = jax.block_until_ready(out)

    ref = reference(x, pad_mask, params)
    assert out.shape == (T, B, C)
    # Exact softmax divide -> tolerance tightened vs. the previous version;
    # remaining slack covers MXU f32 pass differences vs. the XLA reference.
    assert jnp.allclose(out, ref, atol=1e-3, rtol=1e-3), "mismatch vs reference"
    print("KERNEL_OK")
</pallas_src>

<mosaic_0001>
module attributes {stable_mosaic.version = 11 : i64} {
  func.func @encoder_layer_kernel(%arg0: memref<16x32xf32, #tpu.memory_space<vmem>>, %arg1: memref<1x16xf32, #tpu.memory_space<vmem>>, %arg2: memref<3x4x32x8xf32, #tpu.memory_space<vmem>>, %arg3: memref<152x64xf32, #tpu.memory_space<vmem>>, %arg4: memref<16x32xf32, #tpu.memory_space<vmem>>) attributes {dimension_semantics = [], scalar_prefetch = 0 : i64, scratch_operands = 0 : i64, tpu.core_type = #tpu.core_type<tc>} {
    %c0 = arith.constant 0 : index
    %c0_0 = arith.constant 0 : index
    %0 = vector.load %arg0[%c0, %c0_0] : memref<16x32xf32, #tpu.memory_space<vmem>>, vector<16x32xf32>
    %1 = tpu.iota {dimensions = array<i32: 0>} : vector<16x16xi32>
    %c2_i32 = arith.constant 2 : i32
    %c0_i32 = arith.constant 0 : i32
    %2 = arith.cmpi eq, %c2_i32, %c0_i32 : i32
    %c1_i32 = arith.constant 1 : i32
    %3 = arith.select %2, %c1_i32, %c2_i32 : i32
    %4 = vector.broadcast %3 : i32 to vector<16x16xi32>
    %5 = arith.remsi %1, %4 : vector<16x16xi32>
    %c0_i32_1 = arith.constant 0 : i32
    %6 = vector.broadcast %c0_i32_1 : i32 to vector<16x16xi32>
    %7 = arith.cmpi ne, %5, %6 : vector<16x16xi32>
    %c0_i32_2 = arith.constant 0 : i32
    %8 = vector.broadcast %c0_i32_2 : i32 to vector<16x16xi32>
    %9 = arith.cmpi slt, %5, %8 : vector<16x16xi32>
    %c0_i32_3 = arith.constant 0 : i32
    %10 = arith.cmpi slt, %3, %c0_i32_3 : i32
    %11 = vector.broadcast %10 : i1 to vector<16x16xi1>
    %12 = vector.broadcast %11 : vector<16x16xi1> to vector<16x16xi1>
    %13 = arith.xori %9, %12 : vector<16x16xi1>
    %14 = arith.andi %13, %7 : vector<16x16xi1>
    %15 = vector.broadcast %3 : i32 to vector<16x16xi32>
    %16 = arith.addi %5, %15 : vector<16x16xi32>
    %17 = arith.select %14, %16, %5 : vector<16x16xi1>, vector<16x16xi32>
    %18 = tpu.iota {dimensions = array<i32: 1>} : vector<16x16xi32>
    %c2_i32_4 = arith.constant 2 : i32
    %c0_i32_5 = arith.constant 0 : i32
    %19 = arith.cmpi eq, %c2_i32_4, %c0_i32_5 : i32
    %c1_i32_6 = arith.constant 1 : i32
    %20 = arith.select %19, %c1_i32_6, %c2_i32_4 : i32
    %21 = vector.broadcast %20 : i32 to vector<16x16xi32>
    %22 = arith.remsi %18, %21 : vector<16x16xi32>
    %c0_i32_7 = arith.constant 0 : i32
    %23 = vector.broadcast %c0_i32_7 : i32 to vector<16x16xi32>
    %24 = arith.cmpi ne, %22, %23 : vector<16x16xi32>
    %c0_i32_8 = arith.constant 0 : i32
    %25 = vector.broadcast %c0_i32_8 : i32 to vector<16x16xi32>
    %26 = arith.cmpi slt, %22, %25 : vector<16x16xi32>
    %c0_i32_9 = arith.constant 0 : i32
    %27 = arith.cmpi slt, %20, %c0_i32_9 : i32
    %28 = vector.broadcast %27 : i1 to vector<16x16xi1>
    %29 = vector.broadcast %28 : vector<16x16xi1> to vector<16x16xi1>
    %30 = arith.xori %26, %29 : vector<16x16xi1>
    %31 = arith.andi %30, %24 : vector<16x16xi1>
    %32 = vector.broadcast %20 : i32 to vector<16x16xi32>
    %33 = arith.addi %22, %32 : vector<16x16xi32>
    %34 = arith.select %31, %33, %22 : vector<16x16xi1>, vector<16x16xi32>
    %c0_10 = arith.constant 0 : index
    %c0_11 = arith.constant 0 : index
    %35 = vector.load %arg1[%c0_10, %c0_11] : memref<1x16xf32, #tpu.memory_space<vmem>>, vector<1x16xf32>
    %36 = arith.cmpi eq, %17, %34 : vector<16x16xi32>
    %cst = arith.constant 5.000000e-01 : f32
    %37 = vector.broadcast %cst : f32 to vector<1x16xf32>
    %38 = arith.cmpf olt, %35, %37 : vector<1x16xf32>
    %39 = vector.broadcast %38 : vector<1x16xi1> to vector<16x16xi1>
    %40 = arith.andi %36, %39 : vector<16x16xi1>
    %cst_12 = arith.constant 0.000000e+00 : f32
    %cst_13 = arith.constant -1.000000e+30 : f32
    %41 = vector.broadcast %cst_12 : f32 to vector<16x16xf32>
    %42 = vector.broadcast %cst_13 : f32 to vector<16x16xf32>
    %43 = arith.select %40, %41, %42 : vector<16x16xi1>, vector<16x16xf32>
    %cst_14 = arith.constant 0.000000e+00 : f32
    %44 = vector.broadcast %cst_14 : f32 to vector<16x32xf32>
    %c0_15 = arith.constant 0 : index
    %c0_16 = arith.constant 0 : index
    %c0_17 = arith.constant 0 : index
    %c0_18 = arith.constant 0 : index
    %45 = vector.load %arg2[%c0_15, %c0_16, %c0_17, %c0_18] : memref<3x4x32x8xf32, #tpu.memory_space<vmem>>, vector<1x1x32x8xf32>
    %46 = vector.shape_cast %45 : vector<1x1x32x8xf32> to vector<32x8xf32>
    %c1 = arith.constant 1 : index
    %c0_19 = arith.constant 0 : index
    %c0_20 = arith.constant 0 : index
    %c0_21 = arith.constant 0 : index
    %47 = vector.load %arg2[%c1, %c0_19, %c0_20, %c0_21] : memref<3x4x32x8xf32, #tpu.memory_space<vmem>>, vector<1x1x32x8xf32>
    %48 = vector.shape_cast %47 : vector<1x1x32x8xf32> to vector<32x8xf32>
    %c2 = arith.constant 2 : index
    %c0_22 = arith.constant 0 : index
    %c0_23 = arith.constant 0 : index
    %c0_24 = arith.constant 0 : index
    %49 = vector.load %arg2[%c2, %c0_22, %c0_23, %c0_24] : memref<3x4x32x8xf32, #tpu.memory_space<vmem>>, vector<1x1x32x8xf32>
    %50 = vector.shape_cast %49 : vector<1x1x32x8xf32> to vector<32x8xf32>
    %c128 = arith.constant 128 : index
    %c0_25 = arith.constant 0 : index
    %51 = vector.load %arg3[%c128, %c0_25] : memref<152x64xf32, #tpu.memory_space<vmem>>, vector<1x8xf32>
    %c132 = arith.constant 132 : index
    %c0_26 = arith.constant 0 : index
    %52 = vector.load %arg3[%c132, %c0_26] : memref<152x64xf32, #tpu.memory_space<vmem>>, vector<1x8xf32>
    %c136 = arith.constant 136 : index
    %c0_27 = arith.constant 0 : index
    %53 = vector.load %arg3[%c136, %c0_27] : memref<152x64xf32, #tpu.memory_space<vmem>>, vector<1x8xf32>
    %cst_28 = arith.constant dense<0.000000e+00> : vector<16x8xf32>
    %54 = tpu.matmul %0, %46, %cst_28 {dimension_numbers = #tpu.dot_dimension_numbers<[1], [0], [0], [1], [0, 0, 1, 1], [], []>} : vector<16x32xf32>, vector<32x8xf32>, vector<16x8xf32> -> vector<16x8xf32>
    %55 = vector.broadcast %51 : vector<1x8xf32> to vector<16x8xf32>
    %56 = arith.addf %54, %55 : vector<16x8xf32>
    %cst_29 = arith.constant dense<0.000000e+00> : vector<16x8xf32>
    %57 = tpu.matmul %0, %48, %cst_29 {dimension_numbers = #tpu.dot_dimension_numbers<[1], [0], [0], [1], [0, 0, 1, 1], [], []>} : vector<16x32xf32>, vector<32x8xf32>, vector<16x8xf32> -> vector<16x8xf32>
    %58 = vector.broadcast %52 : vector<1x8xf32> to vector<16x8xf32>
    %59 = arith.addf %57, %58 : vector<16x8xf32>
    %cst_30 = arith.constant dense<0.000000e+00> : vector<16x8xf32>
    %60 = tpu.matmul %0, %50, %cst_30 {dimension_numbers = #tpu.dot_dimension_numbers<[1], [0], [0], [1], [0, 0, 1, 1], [], []>} : vector<16x32xf32>, vector<32x8xf32>, vector<16x8xf32> -> vector<16x8xf32>
    %61 = vector.broadcast %53 : vector<1x8xf32> to vector<16x8xf32>
    %62 = arith.addf %60, %61 : vector<16x8xf32>
    %cst_31 = arith.constant dense<0.000000e+00> : vector<16x16xf32>
    %63 = tpu.matmul %56, %59, %cst_31 {dimension_numbers = #tpu.dot_dimension_numbers<[1], [1], [0], [0], [0, 0, 1, 0], [], []>} : vector<16x8xf32>, vector<16x8xf32>, vector<16x16xf32> -> vector<16x16xf32>
    %64 = arith.addf %63, %43 : vector<16x16xf32>
    %cst_32 = arith.constant dense<0xFF800000> : vector<16xf32>
    %65 = vector.multi_reduction <maximumf>, %64, %cst_32 [1] : vector<16x16xf32> to vector<16xf32>
    %66 = vector.shape_cast %65 : vector<16xf32> to vector<16x1xf32>
    %67 = vector.broadcast %66 : vector<16x1xf32> to vector<16x16xf32>
    %68 = arith.subf %64, %67 : vector<16x16xf32>
    %69 = math.exp %68 : vector<16x16xf32>
    %cst_33 = arith.constant dense<0.000000e+00> : vector<16xf32>
    %70 = vector.multi_reduction <add>, %69, %cst_33 [1] : vector<16x16xf32> to vector<16xf32>
    %71 = vector.shape_cast %70 : vector<16xf32> to vector<16x1xf32>
    %72 = vector.broadcast %71 : vector<16x1xf32> to vector<16x16xf32>
    %73 = arith.divf %69, %72 : vector<16x16xf32>
    %cst_34 = arith.constant dense<0.000000e+00> : vector<16x8xf32>
    %74 = tpu.matmul %73, %62, %cst_34 {dimension_numbers = #tpu.dot_dimension_numbers<[1], [0], [0], [1], [0, 0, 1, 1], [], []>} : vector<16x16xf32>, vector<16x8xf32>, vector<16x8xf32> -> vector<16x8xf32>
    %c0_35 = arith.constant 0 : index
    %c0_36 = arith.constant 0 : index
    %75 = vector.load %arg3[%c0_35, %c0_36] : memref<152x64xf32, #tpu.memory_space<vmem>>, vector<8x32xf32>
    %cst_37 = arith.constant dense<0.000000e+00> : vector<16x32xf32>
    %76 = tpu.matmul %74, %75, %cst_37 {dimension_numbers = #tpu.dot_dimension_numbers<[1], [0], [0], [1], [0, 0, 1, 1], [], []>} : vector<16x8xf32>, vector<8x32xf32>, vector<16x32xf32> -> vector<16x32xf32>
    %77 = arith.addf %44, %76 : vector<16x32xf32>
    %c0_38 = arith.constant 0 : index
    %c1_39 = arith.constant 1 : index
    %c0_40 = arith.constant 0 : index
    %c0_41 = arith.constant 0 : index
    %78 = vector.load %arg2[%c0_38, %c1_39, %c0_40, %c0_41] : memref<3x4x32x8xf32, #tpu.memory_space<vmem>>, vector<1x1x32x8xf32>
    %79 = vector.shape_cast %78 : vector<1x1x32x8xf32> to vector<32x8xf32>
    %c1_42 = arith.constant 1 : index
    %c1_43 = arith.constant 1 : index
    %c0_44 = arith.constant 0 : index
    %c0_45 = arith.constant 0 : index
    %80 = vector.load %arg2[%c1_42, %c1_43, %c0_44, %c0_45] : memref<3x4x32x8xf32, #tpu.memory_space<vmem>>, vector<1x1x32x8xf32>
    %81 = vector.shape_cast %80 : vector<1x1x32x8xf32> to vector<32x8xf32>
    %c2_46 = arith.constant 2 : index
    %c1_47 = arith.constant 1 : index
    %c0_48 = arith.constant 0 : index
    %c0_49 = arith.constant 0 : index
    %82 = vector.load %arg2[%c2_46, %c1_47, %c0_48, %c0_49] : memref<3x4x32x8xf32, #tpu.memory_space<vmem>>, vector<1x1x32x8xf32>
    %83 = vector.shape_cast %82 : vector<1x1x32x8xf32> to vector<32x8xf32>
    %c129 = arith.constant 129 : index
    %c0_50 = arith.constant 0 : index
    %84 = vector.load %arg3[%c129, %c0_50] : memref<152x64xf32, #tpu.memory_space<vmem>>, vector<1x8xf32>
    %c133 = arith.constant 133 : index
    %c0_51 = arith.constant 0 : index
    %85 = vector.load %arg3[%c133, %c0_51] : memref<152x64xf32, #tpu.memory_space<vmem>>, vector<1x8xf32>
    %c137 = arith.constant 137 : index
    %c0_52 = arith.constant 0 : index
    %86 = vector.load %arg3[%c137, %c0_52] : memref<152x64xf32, #tpu.memory_space<vmem>>, vector<1x8xf32>
    %cst_53 = arith.constant dense<0.000000e+00> : vector<16x8xf32>
    %87 = tpu.matmul %0, %79, %cst_53 {dimension_numbers = #tpu.dot_dimension_numbers<[1], [0], [0], [1], [0, 0, 1, 1], [], []>} : vector<16x32xf32>, vector<32x8xf32>, vector<16x8xf32> -> vector<16x8xf32>
    %88 = vector.broadcast %84 : vector<1x8xf32> to vector<16x8xf32>
    %89 = arith.addf %87, %88 : vector<16x8xf32>
    %cst_54 = arith.constant dense<0.000000e+00> : vector<16x8xf32>
    %90 = tpu.matmul %0, %81, %cst_54 {dimension_numbers = #tpu.dot_dimension_numbers<[1], [0], [0], [1], [0, 0, 1, 1], [], []>} : vector<16x32xf32>, vector<32x8xf32>, vector<16x8xf32> -> vector<16x8xf32>
    %91 = vector.broadcast %85 : vector<1x8xf32> to vector<16x8xf32>
    %92 = arith.addf %90, %91 : vector<16x8xf32>
    %cst_55 = arith.constant dense<0.000000e+00> : vector<16x8xf32>
    %93 = tpu.matmul %0, %83, %cst_55 {dimension_numbers = #tpu.dot_dimension_numbers<[1], [0], [0], [1], [0, 0, 1, 1], [], []>} : vector<16x32xf32>, vector<32x8xf32>, vector<16x8xf32> -> vector<16x8xf32>
    %94 = vector.broadcast %86 : vector<1x8xf32> to vector<16x8xf32>
    %95 = arith.addf %93, %94 : vector<16x8xf32>
    %cst_56 = arith.constant dense<0.000000e+00> : vector<16x16xf32>
    %96 = tpu.matmul %89, %92, %cst_56 {dimension_numbers = #tpu.dot_dimension_numbers<[1], [1], [0], [0], [0, 0, 1, 0], [], []>} : vector<16x8xf32>, vector<16x8xf32>, vector<16x16xf32> -> vector<16x16xf32>
    %97 = arith.addf %96, %43 : vector<16x16xf32>
    %cst_57 = arith.constant dense<0xFF800000> : vector<16xf32>
    %98 = vector.multi_reduction <maximumf>, %97, %cst_57 [1] : vector<16x16xf32> to vector<16xf32>
    %99 = vector.shape_cast %98 : vector<16xf32> to vector<16x1xf32>
    %100 = vector.broadcast %99 : vector<16x1xf32> to vector<16x16xf32>
    %101 = arith.subf %97, %100 : vector<16x16xf32>
    %102 = math.exp %101 : vector<16x16xf32>
    %cst_58 = arith.constant dense<0.000000e+00> : vector<16xf32>
    %103 = vector.multi_reduction <add>, %102, %cst_58 [1] : vector<16x16xf32> to vector<16xf32>
    %104 = vector.shape_cast %103 : vector<16xf32> to vector<16x1xf32>
    %105 = vector.broadcast %104 : vector<16x1xf32> to vector<16x16xf32>
    %106 = arith.divf %102, %105 : vector<16x16xf32>
    %cst_59 = arith.constant dense<0.000000e+00> : vector<16x8xf32>
    %107 = tpu.matmul %106, %95, %cst_59 {dimension_numbers = #tpu.dot_dimension_numbers<[1], [0], [0], [1], [0, 0, 1, 1], [], []>} : vector<16x16xf32>, vector<16x8xf32>, vector<16x8xf32> -> vector<16x8xf32>
    %c8 = arith.constant 8 : index
    %c0_60 = arith.constant 0 : index
    %108 = vector.load %arg3[%c8, %c0_60] : memref<152x64xf32, #tpu.memory_space<vmem>>, vector<8x32xf32>
    %cst_61 = arith.constant dense<0.000000e+00> : vector<16x32xf32>
    %109 = tpu.matmul %107, %108, %cst_61 {dimension_numbers = #tpu.dot_dimension_numbers<[1], [0], [0], [1], [0, 0, 1, 1], [], []>} : vector<16x8xf32>, vector<8x32xf32>, vector<16x32xf32> -> vector<16x32xf32>
    %110 = arith.addf %77, %109 : vector<16x32xf32>
    %c0_62 = arith.constant 0 : index
    %c2_63 = arith.constant 2 : index
    %c0_64 = arith.constant 0 : index
    %c0_65 = arith.constant 0 : index
    %111 = vector.load %arg2[%c0_62, %c2_63, %c0_64, %c0_65] : memref<3x4x32x8xf32, #tpu.memory_space<vmem>>, vector<1x1x32x8xf32>
    %112 = vector.shape_cast %111 : vector<1x1x32x8xf32> to vector<32x8xf32>
    %c1_66 = arith.constant 1 : index
    %c2_67 = arith.constant 2 : index
    %c0_68 = arith.constant 0 : index
    %c0_69 = arith.constant 0 : index
    %113 = vector.load %arg2[%c1_66, %c2_67, %c0_68, %c0_69] : memref<3x4x32x8xf32, #tpu.memory_space<vmem>>, vector<1x1x32x8xf32>
    %114 = vector.shape_cast %113 : vector<1x1x32x8xf32> to vector<32x8xf32>
    %c2_70 = arith.constant 2 : index
    %c2_71 = arith.constant 2 : index
    %c0_72 = arith.constant 0 : index
    %c0_73 = arith.constant 0 : index
    %115 = vector.load %arg2[%c2_70, %c2_71, %c0_72, %c0_73] : memref<3x4x32x8xf32, #tpu.memory_space<vmem>>, vector<1x1x32x8xf32>
    %116 = vector.shape_cast %115 : vector<1x1x32x8xf32> to vector<32x8xf32>
    %c130 = arith.constant 130 : index
    %c0_74 = arith.constant 0 : index
    %117 = vector.load %arg3[%c130, %c0_74] : memref<152x64xf32, #tpu.memory_space<vmem>>, vector<1x8xf32>
    %c134 = arith.constant 134 : index
    %c0_75 = arith.constant 0 : index
    %118 = vector.load %arg3[%c134, %c0_75] : memref<152x64xf32, #tpu.memory_space<vmem>>, vector<1x8xf32>
    %c138 = arith.constant 138 : index
    %c0_76 = arith.constant 0 : index
    %119 = vector.load %arg3[%c138, %c0_76] : memref<152x64xf32, #tpu.memory_space<vmem>>, vector<1x8xf32>
    %cst_77 = arith.constant dense<0.000000e+00> : vector<16x8xf32>
    %120 = tpu.matmul %0, %112, %cst_77 {dimension_numbers = #tpu.dot_dimension_numbers<[1], [0], [0], [1], [0, 0, 1, 1], [], []>} : vector<16x32xf32>, vector<32x8xf32>, vector<16x8xf32> -> vector<16x8xf32>
    %121 = vector.broadcast %117 : vector<1x8xf32> to vector<16x8xf32>
    %122 = arith.addf %120, %121 : vector<16x8xf32>
    %cst_78 = arith.constant dense<0.000000e+00> : vector<16x8xf32>
    %123 = tpu.matmul %0, %114, %cst_78 {dimension_numbers = #tpu.dot_dimension_numbers<[1], [0], [0], [1], [0, 0, 1, 1], [], []>} : vector<16x32xf32>, vector<32x8xf32>, vector<16x8xf32> -> vector<16x8xf32>
    %124 = vector.broadcast %118 : vector<1x8xf32> to vector<16x8xf32>
    %125 = arith.addf %123, %124 : vector<16x8xf32>
    %cst_79 = arith.constant dense<0.000000e+00> : vector<16x8xf32>
    %126 = tpu.matmul %0, %116, %cst_79 {dimension_numbers = #tpu.dot_dimension_numbers<[1], [0], [0], [1], [0, 0, 1, 1], [], []>} : vector<16x32xf32>, vector<32x8xf32>, vector<16x8xf32> -> vector<16x8xf32>
    %127 = vector.broadcast %119 : vector<1x8xf32> to vector<16x8xf32>
    %128 = arith.addf %126, %127 : vector<16x8xf32>
    %cst_80 = arith.constant dense<0.000000e+00> : vector<16x16xf32>
    %129 = tpu.matmul %122, %125, %cst_80 {dimension_numbers = #tpu.dot_dimension_numbers<[1], [1], [0], [0], [0, 0, 1, 0], [], []>} : vector<16x8xf32>, vector<16x8xf32>, vector<16x16xf32> -> vector<16x16xf32>
    %130 = arith.addf %129, %43 : vector<16x16xf32>
    %cst_81 = arith.constant dense<0xFF800000> : vector<16xf32>
    %131 = vector.multi_reduction <maximumf>, %130, %cst_81 [1] : vector<16x16xf32> to vector<16xf32>
    %132 = vector.shape_cast %131 : vector<16xf32> to vector<16x1xf32>
    %133 = vector.broadcast %132 : vector<16x1xf32> to vector<16x16xf32>
    %134 = arith.subf %130, %133 : vector<16x16xf32>
    %135 = math.exp %134 : vector<16x16xf32>
    %cst_82 = arith.constant dense<0.000000e+00> : vector<16xf32>
    %136 = vector.multi_reduction <add>, %135, %cst_82 [1] : vector<16x16xf32> to vector<16xf32>
    %137 = vector.shape_cast %136 : vector<16xf32> to vector<16x1xf32>
    %138 = vector.broadcast %137 : vector<16x1xf32> to vector<16x16xf32>
    %139 = arith.divf %135, %138 : vector<16x16xf32>
    %cst_83 = arith.constant dense<0.000000e+00> : vector<16x8xf32>
    %140 = tpu.matmul %139, %128, %cst_83 {dimension_numbers = #tpu.dot_dimension_numbers<[1], [0], [0], [1], [0, 0, 1, 1], [], []>} : vector<16x16xf32>, vector<16x8xf32>, vector<16x8xf32> -> vector<16x8xf32>
    %c16 = arith.constant 16 : index
    %c0_84 = arith.constant 0 : index
    %141 = vector.load %arg3[%c16, %c0_84] : memref<152x64xf32, #tpu.memory_space<vmem>>, vector<8x32xf32>
    %cst_85 = arith.constant dense<0.000000e+00> : vector<16x32xf32>
    %142 = tpu.matmul %140, %141, %cst_85 {dimension_numbers = #tpu.dot_dimension_numbers<[1], [0], [0], [1], [0, 0, 1, 1], [], []>} : vector<16x8xf32>, vector<8x32xf32>, vector<16x32xf32> -> vector<16x32xf32>
    %143 = arith.addf %110, %142 : vector<16x32xf32>
    %c0_86 = arith.constant 0 : index
    %c3 = arith.constant 3 : index
    %c0_87 = arith.constant 0 : index
    %c0_88 = arith.constant 0 : index
    %144 = vector.load %arg2[%c0_86, %c3, %c0_87, %c0_88] : memref<3x4x32x8xf32, #tpu.memory_space<vmem>>, vector<1x1x32x8xf32>
    %145 = vector.shape_cast %144 : vector<1x1x32x8xf32> to vector<32x8xf32>
    %c1_89 = arith.constant 1 : index
    %c3_90 = arith.constant 3 : index
    %c0_91 = arith.constant 0 : index
    %c0_92 = arith.constant 0 : index
    %146 = vector.load %arg2[%c1_89, %c3_90, %c0_91, %c0_92] : memref<3x4x32x8xf32, #tpu.memory_space<vmem>>, vector<1x1x32x8xf32>
    %147 = vector.shape_cast %146 : vector<1x1x32x8xf32> to vector<32x8xf32>
    %c2_93 = arith.constant 2 : index
    %c3_94 = arith.constant 3 : index
    %c0_95 = arith.constant 0 : index
    %c0_96 = arith.constant 0 : index
    %148 = vector.load %arg2[%c2_93, %c3_94, %c0_95, %c0_96] : memref<3x4x32x8xf32, #tpu.memory_space<vmem>>, vector<1x1x32x8xf32>
    %149 = vector.shape_cast %148 : vector<1x1x32x8xf32> to vector<32x8xf32>
    %c131 = arith.constant 131 : index
    %c0_97 = arith.constant 0 : index
    %150 = vector.load %arg3[%c131, %c0_97] : memref<152x64xf32, #tpu.memory_space<vmem>>, vector<1x8xf32>
    %c135 = arith.constant 135 : index
    %c0_98 = arith.constant 0 : index
    %151 = vector.load %arg3[%c135, %c0_98] : memref<152x64xf32, #tpu.memory_space<vmem>>, vector<1x8xf32>
    %c139 = arith.constant 139 : index
    %c0_99 = arith.constant 0 : index
    %152 = vector.load %arg3[%c139, %c0_99] : memref<152x64xf32, #tpu.memory_space<vmem>>, vector<1x8xf32>
    %cst_100 = arith.constant dense<0.000000e+00> : vector<16x8xf32>
    %153 = tpu.matmul %0, %145, %cst_100 {dimension_numbers = #tpu.dot_dimension_numbers<[1], [0], [0], [1], [0, 0, 1, 1], [], []>} : vector<16x32xf32>, vector<32x8xf32>, vector<16x8xf32> -> vector<16x8xf32>
    %154 = vector.broadcast %150 : vector<1x8xf32> to vector<16x8xf32>
    %155 = arith.addf %153, %154 : vector<16x8xf32>
    %cst_101 = arith.constant dense<0.000000e+00> : vector<16x8xf32>
    %156 = tpu.matmul %0, %147, %cst_101 {dimension_numbers = #tpu.dot_dimension_numbers<[1], [0], [0], [1], [0, 0, 1, 1], [], []>} : vector<16x32xf32>, vector<32x8xf32>, vector<16x8xf32> -> vector<16x8xf32>
    %157 = vector.broadcast %151 : vector<1x8xf32> to vector<16x8xf32>
    %158 = arith.addf %156, %157 : vector<16x8xf32>
    %cst_102 = arith.constant dense<0.000000e+00> : vector<16x8xf32>
    %159 = tpu.matmul %0, %149, %cst_102 {dimension_numbers = #tpu.dot_dimension_numbers<[1], [0], [0], [1], [0, 0, 1, 1], [], []>} : vector<16x32xf32>, vector<32x8xf32>, vector<16x8xf32> -> vector<16x8xf32>
    %160 = vector.broadcast %152 : vector<1x8xf32> to vector<16x8xf32>
    %161 = arith.addf %159, %160 : vector<16x8xf32>
    %cst_103 = arith.constant dense<0.000000e+00> : vector<16x16xf32>
    %162 = tpu.matmul %155, %158, %cst_103 {dimension_numbers = #tpu.dot_dimension_numbers<[1], [1], [0], [0], [0, 0, 1, 0], [], []>} : vector<16x8xf32>, vector<16x8xf32>, vector<16x16xf32> -> vector<16x16xf32>
    %163 = arith.addf %162, %43 : vector<16x16xf32>
    %cst_104 = arith.constant dense<0xFF800000> : vector<16xf32>
    %164 = vector.multi_reduction <maximumf>, %163, %cst_104 [1] : vector<16x16xf32> to vector<16xf32>
    %165 = vector.shape_cast %164 : vector<16xf32> to vector<16x1xf32>
    %166 = vector.broadcast %165 : vector<16x1xf32> to vector<16x16xf32>
    %167 = arith.subf %163, %166 : vector<16x16xf32>
    %168 = math.exp %167 : vector<16x16xf32>
    %cst_105 = arith.constant dense<0.000000e+00> : vector<16xf32>
    %169 = vector.multi_reduction <add>, %168, %cst_105 [1] : vector<16x16xf32> to vector<16xf32>
    %170 = vector.shape_cast %169 : vector<16xf32> to vector<16x1xf32>
    %171 = vector.broadcast %170 : vector<16x1xf32> to vector<16x16xf32>
    %172 = arith.divf %168, %171 : vector<16x16xf32>
    %cst_106 = arith.constant dense<0.000000e+00> : vector<16x8xf32>
    %173 = tpu.matmul %172, %161, %cst_106 {dimension_numbers = #tpu.dot_dimension_numbers<[1], [0], [0], [1], [0, 0, 1, 1], [], []>} : vector<16x16xf32>, vector<16x8xf32>, vector<16x8xf32> -> vector<16x8xf32>
    %c24 = arith.constant 24 : index
    %c0_107 = arith.constant 0 : index
    %174 = vector.load %arg3[%c24, %c0_107] : memref<152x64xf32, #tpu.memory_space<vmem>>, vector<8x32xf32>
    %cst_108 = arith.constant dense<0.000000e+00> : vector<16x32xf32>
    %175 = tpu.matmul %173, %174, %cst_108 {dimension_numbers = #tpu.dot_dimension_numbers<[1], [0], [0], [1], [0, 0, 1, 1], [], []>} : vector<16x8xf32>, vector<8x32xf32>, vector<16x32xf32> -> vector<16x32xf32>
    %176 = arith.addf %143, %175 : vector<16x32xf32>
    %c140 = arith.constant 140 : index
    %c0_109 = arith.constant 0 : index
    %177 = vector.load %arg3[%c140, %c0_109] : memref<152x64xf32, #tpu.memory_space<vmem>>, vector<1x32xf32>
    %178 = vector.broadcast %177 : vector<1x32xf32> to vector<16x32xf32>
    %179 = arith.addf %176, %178 : vector<16x32xf32>
    %180 = arith.addf %0, %179 : vector<16x32xf32>
    %c141 = arith.constant 141 : index
    %c0_110 = arith.constant 0 : index
    %181 = vector.load %arg3[%c141, %c0_110] : memref<152x64xf32, #tpu.memory_space<vmem>>, vector<1x32xf32>
    %c142 = arith.constant 142 : index
    %c0_111 = arith.constant 0 : index
    %182 = vector.load %arg3[%c142, %c0_111] : memref<152x64xf32, #tpu.memory_space<vmem>>, vector<1x32xf32>
    %cst_112 = arith.constant dense<0.000000e+00> : vector<16xf32>
    %183 = vector.multi_reduction <add>, %180, %cst_112 [1] : vector<16x32xf32> to vector<16xf32>
    %184 = vector.shape_cast %183 : vector<16xf32> to vector<16x1xf32>
    %cst_113 = arith.constant 3.200000e+01 : f32
    %185 = vector.broadcast %cst_113 : f32 to vector<16x1xf32>
    %186 = arith.divf %184, %185 : vector<16x1xf32>
    %187 = vector.broadcast %186 : vector<16x1xf32> to vector<16x32xf32>
    %188 = arith.subf %180, %187 : vector<16x32xf32>
    %189 = arith.mulf %188, %188 : vector<16x32xf32>
    %cst_114 = arith.constant dense<0.000000e+00> : vector<16xf32>
    %190 = vector.multi_reduction <add>, %189, %cst_114 [1] : vector<16x32xf32> to vector<16xf32>
    %191 = vector.shape_cast %190 : vector<16xf32> to vector<16x1xf32>
    %cst_115 = arith.constant 3.200000e+01 : f32
    %192 = vector.broadcast %cst_115 : f32 to vector<16x1xf32>
    %193 = arith.divf %191, %192 : vector<16x1xf32>
    %194 = vector.broadcast %186 : vector<16x1xf32> to vector<16x32xf32>
    %195 = arith.subf %180, %194 : vector<16x32xf32>
    %cst_116 = arith.constant 9.99999974E-6 : f32
    %196 = vector.broadcast %cst_116 : f32 to vector<16x1xf32>
    %197 = arith.addf %193, %196 : vector<16x1xf32>
    %198 = math.rsqrt %197 : vector<16x1xf32>
    %199 = vector.broadcast %198 : vector<16x1xf32> to vector<16x32xf32>
    %200 = arith.mulf %195, %199 : vector<16x32xf32>
    %201 = vector.broadcast %181 : vector<1x32xf32> to vector<16x32xf32>
    %202 = arith.mulf %200, %201 : vector<16x32xf32>
    %203 = vector.broadcast %182 : vector<1x32xf32> to vector<16x32xf32>
    %204 = arith.addf %202, %203 : vector<16x32xf32>
    %c32 = arith.constant 32 : index
    %c0_117 = arith.constant 0 : index
    %205 = vector.load %arg3[%c32, %c0_117] : memref<152x64xf32, #tpu.memory_space<vmem>>, vector<32x64xf32>
    %cst_118 = arith.constant dense<0.000000e+00> : vector<16x64xf32>
    %206 = tpu.matmul %204, %205, %cst_118 {dimension_numbers = #tpu.dot_dimension_numbers<[1], [0], [0], [1], [0, 0, 1, 1], [], []>} : vector<16x32xf32>, vector<32x64xf32>, vector<16x64xf32> -> vector<16x64xf32>
    %c143 = arith.constant 143 : index
    %c0_119 = arith.constant 0 : index
    %207 = vector.load %arg3[%c143, %c0_119] : memref<152x64xf32, #tpu.memory_space<vmem>>, vector<1x64xf32>
    %208 = vector.broadcast %207 : vector<1x64xf32> to vector<16x64xf32>
    %209 = arith.addf %206, %208 : vector<16x64xf32>
    %cst_120 = arith.constant 0.000000e+00 : f32
    %210 = vector.broadcast %cst_120 : f32 to vector<16x64xf32>
    %211 = arith.maximumf %209, %210 : vector<16x64xf32>
    %c64 = arith.constant 64 : index
    %c0_121 = arith.constant 0 : index
    %212 = vector.load %arg3[%c64, %c0_121] : memref<152x64xf32, #tpu.memory_space<vmem>>, vector<64x32xf32>
    %cst_122 = arith.constant dense<0.000000e+00> : vector<16x32xf32>
    %213 = tpu.matmul %211, %212, %cst_122 {dimension_numbers = #tpu.dot_dimension_numbers<[1], [0], [0], [1], [0, 0, 1, 1], [], []>} : vector<16x64xf32>, vector<64x32xf32>, vector<16x32xf32> -> vector<16x32xf32>
    %c144 = arith.constant 144 : index
    %c0_123 = arith.constant 0 : index
    %214 = vector.load %arg3[%c144, %c0_123] : memref<152x64xf32, #tpu.memory_space<vmem>>, vector<1x32xf32>
    %215 = vector.broadcast %214 : vector<1x32xf32> to vector<16x32xf32>
    %216 = arith.addf %213, %215 : vector<16x32xf32>
    %217 = arith.addf %204, %216 : vector<16x32xf32>
    %c145 = arith.constant 145 : index
    %c0_124 = arith.constant 0 : index
    %218 = vector.load %arg3[%c145, %c0_124] : memref<152x64xf32, #tpu.memory_space<vmem>>, vector<1x32xf32>
    %c146 = arith.constant 146 : index
    %c0_125 = arith.constant 0 : index
    %219 = vector.load %arg3[%c146, %c0_125] : memref<152x64xf32, #tpu.memory_space<vmem>>, vector<1x32xf32>
    %cst_126 = arith.constant dense<0.000000e+00> : vector<16xf32>
    %220 = vector.multi_reduction <add>, %217, %cst_126 [1] : vector<16x32xf32> to vector<16xf32>
    %221 = vector.shape_cast %220 : vector<16xf32> to vector<16x1xf32>
    %cst_127 = arith.constant 3.200000e+01 : f32
    %222 = vector.broadcast %cst_127 : f32 to vector<16x1xf32>
    %223 = arith.divf %221, %222 : vector<16x1xf32>
    %224 = vector.broadcast %223 : vector<16x1xf32> to vector<16x32xf32>
    %225 = arith.subf %217, %224 : vector<16x32xf32>
    %226 = arith.mulf %225, %225 : vector<16x32xf32>
    %cst_128 = arith.constant dense<0.000000e+00> : vector<16xf32>
    %227 = vector.multi_reduction <add>, %226, %cst_128 [1] : vector<16x32xf32> to vector<16xf32>
    %228 = vector.shape_cast %227 : vector<16xf32> to vector<16x1xf32>
    %cst_129 = arith.constant 3.200000e+01 : f32
    %229 = vector.broadcast %cst_129 : f32 to vector<16x1xf32>
    %230 = arith.divf %228, %229 : vector<16x1xf32>
    %231 = vector.broadcast %223 : vector<16x1xf32> to vector<16x32xf32>
    %232 = arith.subf %217, %231 : vector<16x32xf32>
    %cst_130 = arith.constant 9.99999974E-6 : f32
    %233 = vector.broadcast %cst_130 : f32 to vector<16x1xf32>
    %234 = arith.addf %230, %233 : vector<16x1xf32>
    %235 = math.rsqrt %234 : vector<16x1xf32>
    %236 = vector.broadcast %235 : vector<16x1xf32> to vector<16x32xf32>
    %237 = arith.mulf %232, %236 : vector<16x32xf32>
    %238 = vector.broadcast %218 : vector<1x32xf32> to vector<16x32xf32>
    %239 = arith.mulf %237, %238 : vector<16x32xf32>
    %240 = vector.broadcast %219 : vector<1x32xf32> to vector<16x32xf32>
    %241 = arith.addf %239, %240 : vector<16x32xf32>
    %c0_131 = arith.constant 0 : index
    %c0_132 = arith.constant 0 : index
    %242 = vector.load %arg4[%c0_131, %c0_132] : memref<16x32xf32, #tpu.memory_space<vmem>>, vector<16x32xf32>
    tpu.vector_store %arg4[%c0_131, %c0_132], %241 {strides = array<i32>} : memref<16x32xf32, #tpu.memory_space<vmem>>, vector<16x32xf32>,
    return
  }
}

</mosaic_0001>

<llo_original>
// kernel: transformer_encoder_layer.1
$region0: #{transformer_encoder_layer.1}
  #allocation0 [shape = 'u32[]', space=smem, size = 0x4, offset = 0x4, fixed_abs, tag = 'smem constant byte address 0x4 - core index']
  #allocation1 [shape = 'u32[72,128]{1,0:T(1,128)}', space=vmem, size = 0x9000, scoped, tag = 'internal scratch']
  %s0 = inlined_call_operand.vmem [shape: f32[16,32], index: 0, kind: input, shape index: {}]
  %s1 = inlined_call_operand.vmem [shape: f32[1,16], index: 1, kind: input, shape index: {}]
  %s2 = inlined_call_operand.vmem [shape: f32[3,4,32,8], index: 2, kind: input, shape index: {}]
  %s3 = inlined_call_operand.vmem [shape: f32[152,64], index: 3, kind: input, shape index: {}]
  %s4 = inlined_call_operand.hbm [shape: f32[16,32], index: 4, kind: output, shape index: {}]
  %s5 = sld [smem:[#allocation0]]
  $region26: #{transformer_encoder_layer.1} parent=0
    _
  %s7 = ssub.s32 1, %s5
  %s8 = scalar_select 0, %s7, %s5
  $region1: #{transformer_encoder_layer.1} parent=0
    #allocation2 [shape = 'u8[8192]{0}', space=vmem, size = 0x2000, scoped, tag = 'output window, operand 0, single buffered']
    #allocation3 [shape = 's32[1]{0}', space=sflag, size = 0x4, scoped, tag = 'scoped memory for transformer_encoder_layer.1']
    %9 = vsyncpa [#allocation3], 0
    // Predicated region
    $region2: #{transformer_encoder_layer.1} parent=1 // pred_check
      _
    $region3: #{transformer_encoder_layer.1} parent=1 // pred_check_branch
      %11 = sbr.rel (0) target = $region5
    $region4: #{transformer_encoder_layer.1} parent=1 // pred_region
      _
    $region5: #{transformer_encoder_layer.1} parent=1 // pred_fallthru
      _
    // Predicated region
    $region6: #{transformer_encoder_layer.1} parent=1 // pred_check
      _
    $region7: #{transformer_encoder_layer.1} parent=1 // pred_check_branch
      %13 = sbr.rel (0) target = $region9
    $region8: #{transformer_encoder_layer.1} parent=1 // pred_region
      _
    $region9: #{transformer_encoder_layer.1} parent=1 // pred_fallthru
      _
    // Predicated region
    $region10: #{transformer_encoder_layer.1} parent=1 // pred_check
      _
    $region11: #{transformer_encoder_layer.1} parent=1 // pred_check_branch
      %15 = sbr.rel (0) target = $region13
    $region12: #{transformer_encoder_layer.1} parent=1 // pred_region
      _
    $region13: #{transformer_encoder_layer.1} parent=1 // pred_fallthru
      _
    // Predicated region
    $region14: #{transformer_encoder_layer.1} parent=1 // pred_check
      _
    $region15: #{transformer_encoder_layer.1} parent=1 // pred_check_branch
      %17 = sbr.rel (0) target = $region17
    $region16: #{transformer_encoder_layer.1} parent=1 // pred_region
      _
    $region17: #{transformer_encoder_layer.1} parent=1 // pred_fallthru
      _
    %v18 = vld [vmem:[%s0] sm:$0xff]
    %v19 = vld [vmem:[%s0 + $0x8] sm:$0xff]
    %v20 = vlaneseq
    %v21 = vshrl.u32 %v20, 7
    %v22 = vadd.s32 %v21, 8
    %vm23 = vcmp.lt.s32.totalorder %v21, 0
    %v24 = vsub.s32 0, %v21
    %v25 = vsel %vm23, %v24, %v21
    %v26 = vshrl.u32 %v25, 1
    %v27 = vand.u32 %v25, 1
    %v28 = vsub.s32 0, %v27
    %v29 = vsel %vm23, %v28, %v27
    %vm30 = vcmp.lt.s32.totalorder %v22, 0
    %v31 = vsub.s32 0, %v22
    %v32 = vsel %vm30, %v31, %v22
    %v33 = vshrl.u32 %v32, 1
    %v34 = vand.u32 %v32, 1
    %v35 = vsub.s32 0, %v34
    %v36 = vsel %vm30, %v35, %v34
    %vm37 = vcmp.ne.s32.totalorder %v29, 0
    %vm38 = vcmp.ne.s32.totalorder %v36, 0
    %vm39 = vcmp.lt.s32.totalorder %v29, 0
    %vm40 = vcmp.lt.s32.totalorder %v36, 0
    %vm41 = vmand %vm39, %vm37
    %vm42 = vmand %vm40, %vm38
    %v43 = vadd.s32 %v29, 2
    %v44 = vadd.s32 %v36, 2
    %v45 = vsel %vm41, %v43, %v29
    %v46 = vsel %vm42, %v44, %v36
    %v47 = vlaneseq
    %v48 = vand.u32 %v47, 127
    %vm49 = vcmp.lt.s32.totalorder %v48, 0
    %v50 = vsub.s32 0, %v48
    %v51 = vsel %vm49, %v50, %v48
    %v52 = vshrl.u32 %v51, 1
    %v53 = vand.u32 %v51, 1
    %v54 = vsub.s32 0, %v53
    %v55 = vsel %vm49, %v54, %v53
    %vm56 = vcmp.ne.s32.totalorder %v55, 0
    %vm57 = vcmp.lt.s32.totalorder %v55, 0
    %vm58 = vmand %vm57, %vm56
    %v59 = vadd.s32 %v55, 2
    %v60 = vsel %vm58, %v59, %v55
    %v61 = vld [vmem:[%s1] sm:$0x1]
    %vm62 = vcmp.eq.s32.totalorder %v45, %v60
    %vm63 = vcmp.eq.s32.totalorder %v46, %v60
    %vm64 = vcmp.lt.f32.partialorder %v61, 0.5
    %v65 = vsel %vm64, 1, 0
    %v66 = vperm.slane %v65, 0
    %vm67 = vcmp.eq.s32.totalorder %v66, 1
    %vm68 = vmand %vm62, %vm67
    %vm69 = vmand %vm63, %vm67
    %v70 = vsel %vm68, 0.0, -1e+30
    %v71 = vsel %vm69, 0.0, -1e+30
    %v72 = vld [vmem:[%s2] sm:$0xff]
    %v73 = vld [vmem:[%s2 + $0x8] sm:$0xff]
    %v74 = vld [vmem:[%s2 + $0x10] sm:$0xff]
    %v75 = vld [vmem:[%s2 + $0x18] sm:$0xff]
    %s76 = scalar_lea.vmem %s2, 128
    %v77 = vld [vmem:[%s76] sm:$0xff]
    %v78 = vld [vmem:[%s76 + $0x8] sm:$0xff]
    %v79 = vld [vmem:[%s76 + $0x10] sm:$0xff]
    %v80 = vld [vmem:[%s76 + $0x18] sm:$0xff]
    %s81 = scalar_lea.vmem %s2, 256
    %v82 = vld [vmem:[%s81] sm:$0xff]
    %v83 = vld [vmem:[%s81 + $0x8] sm:$0xff]
    %v84 = vld [vmem:[%s81 + $0x10] sm:$0xff]
    %v85 = vld [vmem:[%s81 + $0x18] sm:$0xff]
    %v86 = vld [vmem:[%s3 + $0x80] sm:$0x1]
    %v87 = vld [vmem:[%s3 + $0x84] sm:$0x1]
    %v88 = vld [vmem:[%s3 + $0x88] sm:$0x1]
    %v89 = vperm.slane %v86, 0
    %vm90 = vcmask 261120
    %v92 = vsel %vm90, %v18, 0
    %v95 = vsel %vm90, %v19, 0
    %97 = vmatpush.msra.mxu0 0.0
    %98 = vmatpush.msra.mxu0 0.0
    %99 = vmatpush.msra.mxu0 0.0
    %100 = vmatpush.msra.mxu0 0.0
    %101 = vmatpush.msra.mxu0 0.0
    %102 = vmatpush.msra.mxu0 0.0
    %103 = vmatpush.msra.mxu0 0.0
    %104 = vmatpush.msra.mxu0 0.0
    %105 = vmatpush.msra.mxu0 0.0
    %106 = vmatpush.msra.mxu0 0.0
    %107 = vmatpush.msra.mxu0 0.0
    %108 = vmatpush.msra.mxu0 0.0
    %109 = vmatpush.msra.mxu0 %v75
    %110 = vmatpush.msra.mxu0 %v74
    %111 = vmatpush.msra.mxu0 %v73
    %112 = vmatpush.msra.mxu0 %v72
    %113 = vmatmul.f32.gmra.mxu0 %v92
    %v114 = vpop.f32.mrf.mxu0
    %v115 = vadd.f32 %v89, %v114
    %116 = vmatmul.f32.gmra.mxu0 %v95
    %v117 = vpop.f32.mrf.mxu0
    %v118 = vadd.f32 %v89, %v117
    %119 = vdwg.mxu0
    %v120 = vperm.slane %v87, 0
    %121 = vmatpush.msra.mxu0 0.0
    %122 = vmatpush.msra.mxu0 0.0
    %123 = vmatpush.msra.mxu0 0.0
    %124 = vmatpush.msra.mxu0 0.0
    %125 = vmatpush.msra.mxu0 0.0
    %126 = vmatpush.msra.mxu0 0.0
    %127 = vmatpush.msra.mxu0 0.0
    %128 = vmatpush.msra.mxu0 0.0
    %129 = vmatpush.msra.mxu0 0.0
    %130 = vmatpush.msra.mxu0 0.0
    %131 = vmatpush.msra.mxu0 0.0
    %132 = vmatpush.msra.mxu0 0.0
    %133 = vmatpush.msra.mxu0 %v80
    %134 = vmatpush.msra.mxu0 %v79
    %135 = vmatpush.msra.mxu0 %v78
    %136 = vmatpush.msra.mxu0 %v77
    %137 = vmatmul.f32.gmra.mxu0 %v92
    %v138 = vpop.f32.mrf.mxu0
    %v139 = vadd.f32 %v120, %v138
    %140 = vmatmul.f32.gmra.mxu0 %v95
    %v141 = vpop.f32.mrf.mxu0
    %v142 = vadd.f32 %v120, %v141
    %143 = vdwg.mxu0
    %v144 = vperm.slane %v88, 0
    %145 = vmatpush.msra.mxu0 0.0
    %146 = vmatpush.msra.mxu0 0.0
    %147 = vmatpush.msra.mxu0 0.0
    %148 = vmatpush.msra.mxu0 0.0
    %149 = vmatpush.msra.mxu0 0.0
    %150 = vmatpush.msra.mxu0 0.0
    %151 = vmatpush.msra.mxu0 0.0
    %152 = vmatpush.msra.mxu0 0.0
    %153 = vmatpush.msra.mxu0 0.0
    %154 = vmatpush.msra.mxu0 0.0
    %155 = vmatpush.msra.mxu0 0.0
    %156 = vmatpush.msra.mxu0 0.0
    %157 = vmatpush.msra.mxu0 %v85
    %158 = vmatpush.msra.mxu0 %v84
    %159 = vmatpush.msra.mxu0 %v83
    %160 = vmatpush.msra.mxu0 %v82
    %161 = vmatmul.f32.gmra.mxu0 %v92
    %v162 = vpop.f32.mrf.mxu0
    %v163 = vadd.f32 %v144, %v162
    %164 = vmatmul.f32.gmra.mxu0 %v95
    %v165 = vpop.f32.mrf.mxu0
    %v166 = vadd.f32 %v144, %v165
    %167 = vdwg.mxu0
    %vm168 = vcmask 64512
    %v170 = vsel %vm168, %v115, 0
    %v173 = vsel %vm168, %v118, 0
    %v176 = vsel %vm168, %v139, 0
    %v179 = vsel %vm168, %v142, 0
    %181 = vmatpush.xpose.msra.mxu0 0.0
    %182 = vmatpush.xpose.msra.mxu0 0.0
    %183 = vmatpush.xpose.msra.mxu0 0.0
    %184 = vmatpush.xpose.msra.mxu0 0.0
    %185 = vmatpush.xpose.msra.mxu0 0.0
    %186 = vmatpush.xpose.msra.mxu0 0.0
    %187 = vmatpush.xpose.msra.mxu0 0.0
    %188 = vmatpush.xpose.msra.mxu0 0.0
    %189 = vmatpush.xpose.msra.mxu0 0.0
    %190 = vmatpush.xpose.msra.mxu0 0.0
    %191 = vmatpush.xpose.msra.mxu0 0.0
    %192 = vmatpush.xpose.msra.mxu0 0.0
    %193 = vmatpush.xpose.msra.mxu0 0.0
    %194 = vmatpush.xpose.msra.mxu0 0.0
    %195 = vmatpush.xpose.msra.mxu0 %v179
    %196 = vmatpush.xpose.msra.mxu0 %v176
    %197 = vmatmul.f32.gmra.mxu0 %v170
    %v198 = vpop.f32.mrf.mxu0
    %v199 = vadd.f32 %v70, %v198
    %200 = vmatmul.f32.gmra.mxu0 %v173
    %v201 = vpop.f32.mrf.mxu0
    %v202 = vadd.f32 %v71, %v201
    %203 = vdwg.mxu0
    %vm204 = vcmask 130048
    %v205 = vsel %vm204, %v199, -inf
    %206 = vmax.xlane.f32.xlu0 %v205
    %v207 = vpop.xlane.xlu0 %206
    %v208 = vsel %vm204, %v202, -inf
    %209 = vmax.xlane.f32.xlu0 %v208
    %v210 = vpop.xlane.xlu0 %209
    %v211 = vsub.f32 %v199, %v207
    %v212 = vsub.f32 %v202, %v210
    %v213 = vmul.f32 %v211, 1.442695
    %v214 = vpow.pop %v213
    %v215 = vmul.f32 %v212, 1.442695
    %v216 = vpow.pop %v215
    %v217 = vsel %vm204, %v214, 0.0
    %218 = vadd.xlane.f32.xlu0 %v217
    %v219 = vpop.xlane.xlu0 %218
    %v220 = vsel %vm204, %v216, 0.0
    %221 = vadd.xlane.f32.xlu0 %v220
    %v222 = vpop.xlane.xlu0 %221
    %v223 = vrcp.pop %v219
    %v224 = vmul.f32 %v219, %v223
    %v225 = vsub.f32 1.0, %v224
    %v226 = vmul.f32 %v223, %v225
    %v227 = vadd.f32 %v223, %v226
    %vm228 = vweird.f32 %v219
    %vm229 = vweird.f32 %v223
    %vm230 = vmor %vm228, %vm229
    %v231 = vsel %vm230, %v223, %v227
    %v232 = vand.u32 2147483647, %v219
    %vm233 = vcmp.eq.f32.partialorder %v232, 8.507059e+37
    %v234 = vand.u32 %v219, 2147483648
    %v235 = vor.u32 1.1754944e-38, %v234
    %v236 = vsel %vm233, %v235, %v231
    %v237 = vmul.f32 %v214, %v236
    %v238 = vrcp.pop %v222
    %v239 = vmul.f32 %v222, %v238
    %v240 = vsub.f32 1.0, %v239
    %v241 = vmul.f32 %v238, %v240
    %v242 = vadd.f32 %v238, %v241
    %vm243 = vweird.f32 %v222
    %vm244 = vweird.f32 %v238
    %vm245 = vmor %vm243, %vm244
    %v246 = vsel %vm245, %v238, %v242
    %v247 = vand.u32 2147483647, %v222
    %vm248 = vcmp.eq.f32.partialorder %v247, 8.507059e+37
    %v249 = vand.u32 %v222, 2147483648
    %v250 = vor.u32 1.1754944e-38, %v249
    %v251 = vsel %vm248, %v250, %v246
    %v252 = vmul.f32 %v216, %v251
    %v254 = vsel %vm204, %v237, 0
    %v257 = vsel %vm204, %v252, 0
    %259 = vmatpush.msra.mxu0 0.0
    %260 = vmatpush.msra.mxu0 0.0
    %261 = vmatpush.msra.mxu0 0.0
    %262 = vmatpush.msra.mxu0 0.0
    %263 = vmatpush.msra.mxu0 0.0
    %264 = vmatpush.msra.mxu0 0.0
    %265 = vmatpush.msra.mxu0 0.0
    %266 = vmatpush.msra.mxu0 0.0
    %267 = vmatpush.msra.mxu0 0.0
    %268 = vmatpush.msra.mxu0 0.0
    %269 = vmatpush.msra.mxu0 0.0
    %270 = vmatpush.msra.mxu0 0.0
    %271 = vmatpush.msra.mxu0 0.0
    %272 = vmatpush.msra.mxu0 0.0
    %273 = vmatpush.msra.mxu0 %v166
    %274 = vmatpush.msra.mxu0 %v163
    %275 = vmatmul.f32.gmra.mxu0 %v254
    %v276 = vpop.f32.mrf.mxu0
    %v277 = vadd.f32 0.0, %v276
    %278 = vmatmul.f32.gmra.mxu0 %v257
    %v279 = vpop.f32.mrf.mxu0
    %v280 = vadd.f32 0.0, %v279
    %281 = vdwg.mxu0
    %v282 = vld [vmem:[%s3] sm:$0xff]
    %s283 = scalar_lea.vmem %s2, 32
    %v284 = vld [vmem:[%s283] sm:$0xff]
    %v285 = vld [vmem:[%s283 + $0x8] sm:$0xff]
    %v286 = vld [vmem:[%s283 + $0x10] sm:$0xff]
    %v287 = vld [vmem:[%s283 + $0x18] sm:$0xff]
    %s288 = scalar_lea.vmem %s2, 160
    %v289 = vld [vmem:[%s288] sm:$0xff]
    %v290 = vld [vmem:[%s288 + $0x8] sm:$0xff]
    %v291 = vld [vmem:[%s288 + $0x10] sm:$0xff]
    %v292 = vld [vmem:[%s288 + $0x18] sm:$0xff]
    %s293 = scalar_lea.vmem %s2, 288
    %v294 = vld [vmem:[%s293] sm:$0xff]
    %v295 = vld [vmem:[%s293 + $0x8] sm:$0xff]
    %v296 = vld [vmem:[%s293 + $0x10] sm:$0xff]
    %v297 = vld [vmem:[%s293 + $0x18] sm:$0xff]
    %v298 = vld [vmem:[%s3 + $0x81] sm:$0x1]
    %v299 = vld [vmem:[%s3 + $0x85] sm:$0x1]
    %v300 = vld [vmem:[%s3 + $0x89] sm:$0x1]
    %v301 = vperm.slane %v298, 0
    %302 = vmatpush.msra.mxu0 0.0
    %303 = vmatpush.msra.mxu0 0.0
    %304 = vmatpush.msra.mxu0 0.0
    %305 = vmatpush.msra.mxu0 0.0
    %306 = vmatpush.msra.mxu0 0.0
    %307 = vmatpush.msra.mxu0 0.0
    %308 = vmatpush.msra.mxu0 0.0
    %309 = vmatpush.msra.mxu0 0.0
    %310 = vmatpush.msra.mxu0 0.0
    %311 = vmatpush.msra.mxu0 0.0
    %312 = vmatpush.msra.mxu0 0.0
    %313 = vmatpush.msra.mxu0 0.0
    %314 = vmatpush.msra.mxu0 %v287
    %315 = vmatpush.msra.mxu0 %v286
    %316 = vmatpush.msra.mxu0 %v285
    %317 = vmatpush.msra.mxu0 %v284
    %318 = vmatmul.f32.gmra.mxu0 %v92
    %v319 = vpop.f32.mrf.mxu0
    %v320 = vadd.f32 %v301, %v319
    %321 = vmatmul.f32.gmra.mxu0 %v95
    %v322 = vpop.f32.mrf.mxu0
    %v323 = vadd.f32 %v301, %v322
    %324 = vdwg.mxu0
    %v325 = vperm.slane %v299, 0
    %326 = vmatpush.msra.mxu0 0.0
    %327 = vmatpush.msra.mxu0 0.0
    %328 = vmatpush.msra.mxu0 0.0
    %329 = vmatpush.msra.mxu0 0.0
    %330 = vmatpush.msra.mxu0 0.0
    %331 = vmatpush.msra.mxu0 0.0
    %332 = vmatpush.msra.mxu0 0.0
    %333 = vmatpush.msra.mxu0 0.0
    %334 = vmatpush.msra.mxu0 0.0
    %335 = vmatpush.msra.mxu0 0.0
    %336 = vmatpush.msra.mxu0 0.0
    %337 = vmatpush.msra.mxu0 0.0
    %338 = vmatpush.msra.mxu0 %v292
    %339 = vmatpush.msra.mxu0 %v291
    %340 = vmatpush.msra.mxu0 %v290
    %341 = vmatpush.msra.mxu0 %v289
    %342 = vmatmul.f32.gmra.mxu0 %v92
    %v343 = vpop.f32.mrf.mxu0
    %v344 = vadd.f32 %v325, %v343
    %345 = vmatmul.f32.gmra.mxu0 %v95
    %v346 = vpop.f32.mrf.mxu0
    %v347 = vadd.f32 %v325, %v346
    %348 = vdwg.mxu0
    %v349 = vperm.slane %v300, 0
    %350 = vmatpush.msra.mxu0 0.0
    %351 = vmatpush.msra.mxu0 0.0
    %352 = vmatpush.msra.mxu0 0.0
    %353 = vmatpush.msra.mxu0 0.0
    %354 = vmatpush.msra.mxu0 0.0
    %355 = vmatpush.msra.mxu0 0.0
    %356 = vmatpush.msra.mxu0 0.0
    %357 = vmatpush.msra.mxu0 0.0
    %358 = vmatpush.msra.mxu0 0.0
    %359 = vmatpush.msra.mxu0 0.0
    %360 = vmatpush.msra.mxu0 0.0
    %361 = vmatpush.msra.mxu0 0.0
    %362 = vmatpush.msra.mxu0 %v297
    %363 = vmatpush.msra.mxu0 %v296
    %364 = vmatpush.msra.mxu0 %v295
    %365 = vmatpush.msra.mxu0 %v294
    %366 = vmatmul.f32.gmra.mxu0 %v92
    %v367 = vpop.f32.mrf.mxu0
    %v368 = vadd.f32 %v349, %v367
    %369 = vmatmul.f32.gmra.mxu0 %v95
    %v370 = vpop.f32.mrf.mxu0
    %v371 = vadd.f32 %v349, %v370
    %372 = vdwg.mxu0
    %v374 = vsel %vm168, %v320, 0
    %v377 = vsel %vm168, %v323, 0
    %v380 = vsel %vm168, %v344, 0
    %v383 = vsel %vm168, %v347, 0
    %385 = vmatpush.xpose.msra.mxu0 0.0
    %386 = vmatpush.xpose.msra.mxu0 0.0
    %387 = vmatpush.xpose.msra.mxu0 0.0
    %388 = vmatpush.xpose.msra.mxu0 0.0
    %389 = vmatpush.xpose.msra.mxu0 0.0
    %390 = vmatpush.xpose.msra.mxu0 0.0
    %391 = vmatpush.xpose.msra.mxu0 0.0
    %392 = vmatpush.xpose.msra.mxu0 0.0
    %393 = vmatpush.xpose.msra.mxu0 0.0
    %394 = vmatpush.xpose.msra.mxu0 0.0
    %395 = vmatpush.xpose.msra.mxu0 0.0
    %396 = vmatpush.xpose.msra.mxu0 0.0
    %397 = vmatpush.xpose.msra.mxu0 0.0
    %398 = vmatpush.xpose.msra.mxu0 0.0
    %399 = vmatpush.xpose.msra.mxu0 %v383
    %400 = vmatpush.xpose.msra.mxu0 %v380
    %401 = vmatmul.f32.gmra.mxu0 %v374
    %v402 = vpop.f32.mrf.mxu0
    %v403 = vadd.f32 %v70, %v402
    %404 = vmatmul.f32.gmra.mxu0 %v377
    %v405 = vpop.f32.mrf.mxu0
    %v406 = vadd.f32 %v71, %v405
    %407 = vdwg.mxu0
    %v408 = vsel %vm204, %v403, -inf
    %409 = vmax.xlane.f32.xlu0 %v408
    %v410 = vpop.xlane.xlu0 %409
    %v411 = vsel %vm204, %v406, -inf
    %412 = vmax.xlane.f32.xlu0 %v411
    %v413 = vpop.xlane.xlu0 %412
    %v414 = vsub.f32 %v403, %v410
    %v415 = vsub.f32 %v406, %v413
    %v416 = vmul.f32 %v414, 1.442695
    %v417 = vpow.pop %v416
    %v418 = vmul.f32 %v415, 1.442695
    %v419 = vpow.pop %v418
    %v420 = vsel %vm204, %v417, 0.0
    %421 = vadd.xlane.f32.xlu0 %v420
    %v422 = vpop.xlane.xlu0 %421
    %v423 = vsel %vm204, %v419, 0.0
    %424 = vadd.xlane.f32.xlu0 %v423
    %v425 = vpop.xlane.xlu0 %424
    %v426 = vrcp.pop %v422
    %v427 = vmul.f32 %v422, %v426
    %v428 = vsub.f32 1.0, %v427
    %v429 = vmul.f32 %v426, %v428
    %v430 = vadd.f32 %v426, %v429
    %vm431 = vweird.f32 %v422
    %vm432 = vweird.f32 %v426
    %vm433 = vmor %vm431, %vm432
    %v434 = vsel %vm433, %v426, %v430
    %v435 = vand.u32 2147483647, %v422
    %vm436 = vcmp.eq.f32.partialorder %v435, 8.507059e+37
    %v437 = vand.u32 %v422, 2147483648
    %v438 = vor.u32 1.1754944e-38, %v437
    %v439 = vsel %vm436, %v438, %v434
    %v440 = vmul.f32 %v417, %v439
    %v441 = vrcp.pop %v425
    %v442 = vmul.f32 %v425, %v441
    %v443 = vsub.f32 1.0, %v442
    %v444 = vmul.f32 %v441, %v443
    %v445 = vadd.f32 %v441, %v444
    %vm446 = vweird.f32 %v425
    %vm447 = vweird.f32 %v441
    %vm448 = vmor %vm446, %vm447
    %v449 = vsel %vm448, %v441, %v445
    %v450 = vand.u32 2147483647, %v425
    %vm451 = vcmp.eq.f32.partialorder %v450, 8.507059e+37
    %v452 = vand.u32 %v425, 2147483648
    %v453 = vor.u32 1.1754944e-38, %v452
    %v454 = vsel %vm451, %v453, %v449
    %v455 = vmul.f32 %v419, %v454
    %v457 = vsel %vm204, %v440, 0
    %v460 = vsel %vm204, %v455, 0
    %462 = vmatpush.msra.mxu0 0.0
    %463 = vmatpush.msra.mxu0 0.0
    %464 = vmatpush.msra.mxu0 0.0
    %465 = vmatpush.msra.mxu0 0.0
    %466 = vmatpush.msra.mxu0 0.0
    %467 = vmatpush.msra.mxu0 0.0
    %468 = vmatpush.msra.mxu0 0.0
    %469 = vmatpush.msra.mxu0 0.0
    %470 = vmatpush.msra.mxu0 0.0
    %471 = vmatpush.msra.mxu0 0.0
    %472 = vmatpush.msra.mxu0 0.0
    %473 = vmatpush.msra.mxu0 0.0
    %474 = vmatpush.msra.mxu0 0.0
    %475 = vmatpush.msra.mxu0 0.0
    %476 = vmatpush.msra.mxu0 %v371
    %477 = vmatpush.msra.mxu0 %v368
    %478 = vmatmul.f32.gmra.mxu0 %v457
    %v479 = vpop.f32.mrf.mxu0
    %v480 = vadd.f32 0.0, %v479
    %481 = vmatmul.f32.gmra.mxu0 %v460
    %v482 = vpop.f32.mrf.mxu0
    %v483 = vadd.f32 0.0, %v482
    %484 = vdwg.mxu0
    %v485 = vld [vmem:[%s3 + $0x8] sm:$0xff]
    %v487 = vsel %vm168, %v480, 0
    %v490 = vsel %vm168, %v483, 0
    %492 = vmatpush.msra.mxu0 0.0
    %493 = vmatpush.msra.mxu0 0.0
    %494 = vmatpush.msra.mxu0 0.0
    %495 = vmatpush.msra.mxu0 0.0
    %496 = vmatpush.msra.mxu0 0.0
    %497 = vmatpush.msra.mxu0 0.0
    %498 = vmatpush.msra.mxu0 0.0
    %499 = vmatpush.msra.mxu0 0.0
    %500 = vmatpush.msra.mxu0 0.0
    %501 = vmatpush.msra.mxu0 0.0
    %502 = vmatpush.msra.mxu0 0.0
    %503 = vmatpush.msra.mxu0 0.0
    %504 = vmatpush.msra.mxu0 0.0
    %505 = vmatpush.msra.mxu0 0.0
    %506 = vmatpush.msra.mxu0 0.0
    %507 = vmatpush.msra.mxu0 %v485
    %508 = vmatmul.f32.gmra.mxu0 %v487
    %v509 = vpop.f32.mrf.mxu0
    %v510 = vadd.f32 0.0, %v509
    %511 = vmatmul.f32.gmra.mxu0 %v490
    %v512 = vpop.f32.mrf.mxu0
    %v513 = vadd.f32 0.0, %v512
    %514 = vdwg.mxu0
    %v516 = vsel %vm168, %v277, 0
    %v519 = vsel %vm168, %v280, 0
    %521 = vmatpush.msra.mxu0 0.0
    %522 = vmatpush.msra.mxu0 0.0
    %523 = vmatpush.msra.mxu0 0.0
    %524 = vmatpush.msra.mxu0 0.0
    %525 = vmatpush.msra.mxu0 0.0
    %526 = vmatpush.msra.mxu0 0.0
    %527 = vmatpush.msra.mxu0 0.0
    %528 = vmatpush.msra.mxu0 0.0
    %529 = vmatpush.msra.mxu0 0.0
    %530 = vmatpush.msra.mxu0 0.0
    %531 = vmatpush.msra.mxu0 0.0
    %532 = vmatpush.msra.mxu0 0.0
    %533 = vmatpush.msra.mxu0 0.0
    %534 = vmatpush.msra.mxu0 0.0
    %535 = vmatpush.msra.mxu0 0.0
    %536 = vmatpush.msra.mxu0 %v282
    %537 = vmatmul.f32.gmra.mxu0 %v516
    %v538 = vpop.f32.mrf.mxu0
    %v539 = vadd.f32 %v510, %v538
    %540 = vmatmul.f32.gmra.mxu0 %v519
    %v541 = vpop.f32.mrf.mxu0
    %v542 = vadd.f32 %v513, %v541
    %543 = vdwg.mxu0
    %s544 = scalar_lea.vmem %s2, 64
    %v545 = vld [vmem:[%s544] sm:$0xff]
    %v546 = vld [vmem:[%s544 + $0x8] sm:$0xff]
    %v547 = vld [vmem:[%s544 + $0x10] sm:$0xff]
    %v548 = vld [vmem:[%s544 + $0x18] sm:$0xff]
    %s549 = scalar_lea.vmem %s2, 192
    %v550 = vld [vmem:[%s549] sm:$0xff]
    %v551 = vld [vmem:[%s549 + $0x8] sm:$0xff]
    %v552 = vld [vmem:[%s549 + $0x10] sm:$0xff]
    %v553 = vld [vmem:[%s549 + $0x18] sm:$0xff]
    %s554 = scalar_lea.vmem %s2, 320
    %v555 = vld [vmem:[%s554] sm:$0xff]
    %v556 = vld [vmem:[%s554 + $0x8] sm:$0xff]
    %v557 = vld [vmem:[%s554 + $0x10] sm:$0xff]
    %v558 = vld [vmem:[%s554 + $0x18] sm:$0xff]
    %v559 = vld [vmem:[%s3 + $0x82] sm:$0x1]
    %v560 = vld [vmem:[%s3 + $0x86] sm:$0x1]
    %v561 = vld [vmem:[%s3 + $0x8a] sm:$0x1]
    %v562 = vperm.slane %v559, 0
    %563 = vmatpush.msra.mxu0 0.0
    %564 = vmatpush.msra.mxu0 0.0
    %565 = vmatpush.msra.mxu0 0.0
    %566 = vmatpush.msra.mxu0 0.0
    %567 = vmatpush.msra.mxu0 0.0
    %568 = vmatpush.msra.mxu0 0.0
    %569 = vmatpush.msra.mxu0 0.0
    %570 = vmatpush.msra.mxu0 0.0
    %571 = vmatpush.msra.mxu0 0.0
    %572 = vmatpush.msra.mxu0 0.0
    %573 = vmatpush.msra.mxu0 0.0
    %574 = vmatpush.msra.mxu0 0.0
    %575 = vmatpush.msra.mxu0 %v548
    %576 = vmatpush.msra.mxu0 %v547
    %577 = vmatpush.msra.mxu0 %v546
    %578 = vmatpush.msra.mxu0 %v545
    %579 = vmatmul.f32.gmra.mxu0 %v92
    %v580 = vpop.f32.mrf.mxu0
    %v581 = vadd.f32 %v562, %v580
    %582 = vmatmul.f32.gmra.mxu0 %v95
    %v583 = vpop.f32.mrf.mxu0
    %v584 = vadd.f32 %v562, %v583
    %585 = vdwg.mxu0
    %v586 = vperm.slane %v560, 0
    %587 = vmatpush.msra.mxu0 0.0
    %588 = vmatpush.msra.mxu0 0.0
    %589 = vmatpush.msra.mxu0 0.0
    %590 = vmatpush.msra.mxu0 0.0
    %591 = vmatpush.msra.mxu0 0.0
    %592 = vmatpush.msra.mxu0 0.0
    %593 = vmatpush.msra.mxu0 0.0
    %594 = vmatpush.msra.mxu0 0.0
    %595 = vmatpush.msra.mxu0 0.0
    %596 = vmatpush.msra.mxu0 0.0
    %597 = vmatpush.msra.mxu0 0.0
    %598 = vmatpush.msra.mxu0 0.0
    %599 = vmatpush.msra.mxu0 %v553
    %600 = vmatpush.msra.mxu0 %v552
    %601 = vmatpush.msra.mxu0 %v551
    %602 = vmatpush.msra.mxu0 %v550
    %603 = vmatmul.f32.gmra.mxu0 %v92
    %v604 = vpop.f32.mrf.mxu0
    %v605 = vadd.f32 %v586, %v604
    %606 = vmatmul.f32.gmra.mxu0 %v95
    %v607 = vpop.f32.mrf.mxu0
    %v608 = vadd.f32 %v586, %v607
    %609 = vdwg.mxu0
    %v610 = vperm.slane %v561, 0
    %611 = vmatpush.msra.mxu0 0.0
    %612 = vmatpush.msra.mxu0 0.0
    %613 = vmatpush.msra.mxu0 0.0
    %614 = vmatpush.msra.mxu0 0.0
    %615 = vmatpush.msra.mxu0 0.0
    %616 = vmatpush.msra.mxu0 0.0
    %617 = vmatpush.msra.mxu0 0.0
    %618 = vmatpush.msra.mxu0 0.0
    %619 = vmatpush.msra.mxu0 0.0
    %620 = vmatpush.msra.mxu0 0.0
    %621 = vmatpush.msra.mxu0 0.0
    %622 = vmatpush.msra.mxu0 0.0
    %623 = vmatpush.msra.mxu0 %v558
    %624 = vmatpush.msra.mxu0 %v557
    %625 = vmatpush.msra.mxu0 %v556
    %626 = vmatpush.msra.mxu0 %v555
    %627 = vmatmul.f32.gmra.mxu0 %v92
    %v628 = vpop.f32.mrf.mxu0
    %v629 = vadd.f32 %v610, %v628
    %630 = vmatmul.f32.gmra.mxu0 %v95
    %v631 = vpop.f32.mrf.mxu0
    %v632 = vadd.f32 %v610, %v631
    %633 = vdwg.mxu0
    %v635 = vsel %vm168, %v581, 0
    %v638 = vsel %vm168, %v584, 0
    %v641 = vsel %vm168, %v605, 0
    %v644 = vsel %vm168, %v608, 0
    %646 = vmatpush.xpose.msra.mxu0 0.0
    %647 = vmatpush.xpose.msra.mxu0 0.0
    %648 = vmatpush.xpose.msra.mxu0 0.0
    %649 = vmatpush.xpose.msra.mxu0 0.0
    %650 = vmatpush.xpose.msra.mxu0 0.0
    %651 = vmatpush.xpose.msra.mxu0 0.0
    %652 = vmatpush.xpose.msra.mxu0 0.0
    %653 = vmatpush.xpose.msra.mxu0 0.0
    %654 = vmatpush.xpose.msra.mxu0 0.0
    %655 = vmatpush.xpose.msra.mxu0 0.0
    %656 = vmatpush.xpose.msra.mxu0 0.0
    %657 = vmatpush.xpose.msra.mxu0 0.0
    %658 = vmatpush.xpose.msra.mxu0 0.0
    %659 = vmatpush.xpose.msra.mxu0 0.0
    %660 = vmatpush.xpose.msra.mxu0 %v644
    %661 = vmatpush.xpose.msra.mxu0 %v641
    %662 = vmatmul.f32.gmra.mxu0 %v635
    %v663 = vpop.f32.mrf.mxu0
    %v664 = vadd.f32 %v70, %v663
    %665 = vmatmul.f32.gmra.mxu0 %v638
    %v666 = vpop.f32.mrf.mxu0
    %v667 = vadd.f32 %v71, %v666
    %668 = vdwg.mxu0
    %v669 = vsel %vm204, %v664, -inf
    %670 = vmax.xlane.f32.xlu0 %v669
    %v671 = vpop.xlane.xlu0 %670
    %v672 = vsel %vm204, %v667, -inf
    %673 = vmax.xlane.f32.xlu0 %v672
    %v674 = vpop.xlane.xlu0 %673
    %v675 = vsub.f32 %v664, %v671
    %v676 = vsub.f32 %v667, %v674
    %v677 = vmul.f32 %v675, 1.442695
    %v678 = vpow.pop %v677
    %v679 = vmul.f32 %v676, 1.442695
    %v680 = vpow.pop %v679
    %v681 = vsel %vm204, %v678, 0.0
    %682 = vadd.xlane.f32.xlu0 %v681
    %v683 = vpop.xlane.xlu0 %682
    %v684 = vsel %vm204, %v680, 0.0
    %685 = vadd.xlane.f32.xlu0 %v684
    %v686 = vpop.xlane.xlu0 %685
    %v687 = vrcp.pop %v683
    %v688 = vmul.f32 %v683, %v687
    %v689 = vsub.f32 1.0, %v688
    %v690 = vmul.f32 %v687, %v689
    %v691 = vadd.f32 %v687, %v690
    %vm692 = vweird.f32 %v683
    %vm693 = vweird.f32 %v687
    %vm694 = vmor %vm692, %vm693
    %v695 = vsel %vm694, %v687, %v691
    %v696 = vand.u32 2147483647, %v683
    %vm697 = vcmp.eq.f32.partialorder %v696, 8.507059e+37
    %v698 = vand.u32 %v683, 2147483648
    %v699 = vor.u32 1.1754944e-38, %v698
    %v700 = vsel %vm697, %v699, %v695
    %v701 = vmul.f32 %v678, %v700
    %v702 = vrcp.pop %v686
    %v703 = vmul.f32 %v686, %v702
    %v704 = vsub.f32 1.0, %v703
    %v705 = vmul.f32 %v702, %v704
    %v706 = vadd.f32 %v702, %v705
    %vm707 = vweird.f32 %v686
    %vm708 = vweird.f32 %v702
    %vm709 = vmor %vm707, %vm708
    %v710 = vsel %vm709, %v702, %v706
    %v711 = vand.u32 2147483647, %v686
    %vm712 = vcmp.eq.f32.partialorder %v711, 8.507059e+37
    %v713 = vand.u32 %v686, 2147483648
    %v714 = vor.u32 1.1754944e-38, %v713
    %v715 = vsel %vm712, %v714, %v710
    %v716 = vmul.f32 %v680, %v715
    %v718 = vsel %vm204, %v701, 0
    %v721 = vsel %vm204, %v716, 0
    %723 = vmatpush.msra.mxu0 0.0
    %724 = vmatpush.msra.mxu0 0.0
    %725 = vmatpush.msra.mxu0 0.0
    %726 = vmatpush.msra.mxu0 0.0
    %727 = vmatpush.msra.mxu0 0.0
    %728 = vmatpush.msra.mxu0 0.0
    %729 = vmatpush.msra.mxu0 0.0
    %730 = vmatpush.msra.mxu0 0.0
    %731 = vmatpush.msra.mxu0 0.0
    %732 = vmatpush.msra.mxu0 0.0
    %733 = vmatpush.msra.mxu0 0.0
    %734 = vmatpush.msra.mxu0 0.0
    %735 = vmatpush.msra.mxu0 0.0
    %736 = vmatpush.msra.mxu0 0.0
    %737 = vmatpush.msra.mxu0 %v632
    %738 = vmatpush.msra.mxu0 %v629
    %739 = vmatmul.f32.gmra.mxu0 %v718
    %v740 = vpop.f32.mrf.mxu0
    %v741 = vadd.f32 0.0, %v740
    %742 = vmatmul.f32.gmra.mxu0 %v721
    %v743 = vpop.f32.mrf.mxu0
    %v744 = vadd.f32 0.0, %v743
    %745 = vdwg.mxu0
    %v746 = vld [vmem:[%s3 + $0x10] sm:$0xff]
    %v748 = vsel %vm168, %v741, 0
    %v751 = vsel %vm168, %v744, 0
    %753 = vmatpush.msra.mxu0 0.0
    %754 = vmatpush.msra.mxu0 0.0
    %755 = vmatpush.msra.mxu0 0.0
    %756 = vmatpush.msra.mxu0 0.0
    %757 = vmatpush.msra.mxu0 0.0
    %758 = vmatpush.msra.mxu0 0.0
    %759 = vmatpush.msra.mxu0 0.0
    %760 = vmatpush.msra.mxu0 0.0
    %761 = vmatpush.msra.mxu0 0.0
    %762 = vmatpush.msra.mxu0 0.0
    %763 = vmatpush.msra.mxu0 0.0
    %764 = vmatpush.msra.mxu0 0.0
    %765 = vmatpush.msra.mxu0 0.0
    %766 = vmatpush.msra.mxu0 0.0
    %767 = vmatpush.msra.mxu0 0.0
    %768 = vmatpush.msra.mxu0 %v746
    %769 = vmatmul.f32.gmra.mxu0 %v748
    %v770 = vpop.f32.mrf.mxu0
    %v771 = vadd.f32 0.0, %v770
    %772 = vmatmul.f32.gmra.mxu0 %v751
    %v773 = vpop.f32.mrf.mxu0
    %v774 = vadd.f32 0.0, %v773
    %775 = vdwg.mxu0
    %v776 = vadd.f32 %v539, %v771
    %v777 = vadd.f32 %v542, %v774
    %s778 = scalar_lea.vmem %s2, 96
    %v779 = vld [vmem:[%s778] sm:$0xff]
    %v780 = vld [vmem:[%s778 + $0x8] sm:$0xff]
    %v781 = vld [vmem:[%s778 + $0x10] sm:$0xff]
    %v782 = vld [vmem:[%s778 + $0x18] sm:$0xff]
    %s783 = scalar_lea.vmem %s2, 224
    %v784 = vld [vmem:[%s783] sm:$0xff]
    %v785 = vld [vmem:[%s783 + $0x8] sm:$0xff]
    %v786 = vld [vmem:[%s783 + $0x10] sm:$0xff]
    %v787 = vld [vmem:[%s783 + $0x18] sm:$0xff]
    %s788 = scalar_lea.vmem %s2, 352
    %v789 = vld [vmem:[%s788] sm:$0xff]
    %v790 = vld [vmem:[%s788 + $0x8] sm:$0xff]
    %v791 = vld [vmem:[%s788 + $0x10] sm:$0xff]
    %v792 = vld [vmem:[%s788 + $0x18] sm:$0xff]
    %v793 = vld [vmem:[%s3 + $0x83] sm:$0x1]
    %v794 = vld [vmem:[%s3 + $0x87] sm:$0x1]
    %v795 = vld [vmem:[%s3 + $0x8b] sm:$0x1]
    %v796 = vperm.slane %v793, 0
    %797 = vmatpush.msra.mxu0 0.0
    %798 = vmatpush.msra.mxu0 0.0
    %799 = vmatpush.msra.mxu0 0.0
    %800 = vmatpush.msra.mxu0 0.0
    %801 = vmatpush.msra.mxu0 0.0
    %802 = vmatpush.msra.mxu0 0.0
    %803 = vmatpush.msra.mxu0 0.0
    %804 = vmatpush.msra.mxu0 0.0
    %805 = vmatpush.msra.mxu0 0.0
    %806 = vmatpush.msra.mxu0 0.0
    %807 = vmatpush.msra.mxu0 0.0
    %808 = vmatpush.msra.mxu0 0.0
    %809 = vmatpush.msra.mxu0 %v782
    %810 = vmatpush.msra.mxu0 %v781
    %811 = vmatpush.msra.mxu0 %v780
    %812 = vmatpush.msra.mxu0 %v779
    %813 = vmatmul.f32.gmra.mxu0 %v92
    %v814 = vpop.f32.mrf.mxu0
    %v815 = vadd.f32 %v796, %v814
    %816 = vmatmul.f32.gmra.mxu0 %v95
    %v817 = vpop.f32.mrf.mxu0
    %v818 = vadd.f32 %v796, %v817
    %819 = vdwg.mxu0
    %v820 = vperm.slane %v794, 0
    %821 = vmatpush.msra.mxu0 0.0
    %822 = vmatpush.msra.mxu0 0.0
    %823 = vmatpush.msra.mxu0 0.0
    %824 = vmatpush.msra.mxu0 0.0
    %825 = vmatpush.msra.mxu0 0.0
    %826 = vmatpush.msra.mxu0 0.0
    %827 = vmatpush.msra.mxu0 0.0
    %828 = vmatpush.msra.mxu0 0.0
    %829 = vmatpush.msra.mxu0 0.0
    %830 = vmatpush.msra.mxu0 0.0
    %831 = vmatpush.msra.mxu0 0.0
    %832 = vmatpush.msra.mxu0 0.0
    %833 = vmatpush.msra.mxu0 %v787
    %834 = vmatpush.msra.mxu0 %v786
    %835 = vmatpush.msra.mxu0 %v785
    %836 = vmatpush.msra.mxu0 %v784
    %837 = vmatmul.f32.gmra.mxu0 %v92
    %v838 = vpop.f32.mrf.mxu0
    %v839 = vadd.f32 %v820, %v838
    %840 = vmatmul.f32.gmra.mxu0 %v95
    %v841 = vpop.f32.mrf.mxu0
    %v842 = vadd.f32 %v820, %v841
    %843 = vdwg.mxu0
    %v844 = vperm.slane %v795, 0
    %845 = vmatpush.msra.mxu0 0.0
    %846 = vmatpush.msra.mxu0 0.0
    %847 = vmatpush.msra.mxu0 0.0
    %848 = vmatpush.msra.mxu0 0.0
    %849 = vmatpush.msra.mxu0 0.0
    %850 = vmatpush.msra.mxu0 0.0
    %851 = vmatpush.msra.mxu0 0.0
    %852 = vmatpush.msra.mxu0 0.0
    %853 = vmatpush.msra.mxu0 0.0
    %854 = vmatpush.msra.mxu0 0.0
    %855 = vmatpush.msra.mxu0 0.0
    %856 = vmatpush.msra.mxu0 0.0
    %857 = vmatpush.msra.mxu0 %v792
    %858 = vmatpush.msra.mxu0 %v791
    %859 = vmatpush.msra.mxu0 %v790
    %860 = vmatpush.msra.mxu0 %v789
    %861 = vmatmul.f32.gmra.mxu0 %v92
    %v862 = vpop.f32.mrf.mxu0
    %v863 = vadd.f32 %v844, %v862
    %864 = vmatmul.f32.gmra.mxu0 %v95
    %v865 = vpop.f32.mrf.mxu0
    %v866 = vadd.f32 %v844, %v865
    %867 = vdwg.mxu0
    %v869 = vsel %vm168, %v815, 0
    %v872 = vsel %vm168, %v818, 0
    %v875 = vsel %vm168, %v839, 0
    %v878 = vsel %vm168, %v842, 0
    %880 = vmatpush.xpose.msra.mxu0 0.0
    %881 = vmatpush.xpose.msra.mxu0 0.0
    %882 = vmatpush.xpose.msra.mxu0 0.0
    %883 = vmatpush.xpose.msra.mxu0 0.0
    %884 = vmatpush.xpose.msra.mxu0 0.0
    %885 = vmatpush.xpose.msra.mxu0 0.0
    %886 = vmatpush.xpose.msra.mxu0 0.0
    %887 = vmatpush.xpose.msra.mxu0 0.0
    %888 = vmatpush.xpose.msra.mxu0 0.0
    %889 = vmatpush.xpose.msra.mxu0 0.0
    %890 = vmatpush.xpose.msra.mxu0 0.0
    %891 = vmatpush.xpose.msra.mxu0 0.0
    %892 = vmatpush.xpose.msra.mxu0 0.0
    %893 = vmatpush.xpose.msra.mxu0 0.0
    %894 = vmatpush.xpose.msra.mxu0 %v878
    %895 = vmatpush.xpose.msra.mxu0 %v875
    %896 = vmatmul.f32.gmra.mxu0 %v869
    %v897 = vpop.f32.mrf.mxu0
    %v898 = vadd.f32 %v70, %v897
    %899 = vmatmul.f32.gmra.mxu0 %v872
    %v900 = vpop.f32.mrf.mxu0
    %v901 = vadd.f32 %v71, %v900
    %902 = vdwg.mxu0
    %v903 = vsel %vm204, %v898, -inf
    %904 = vmax.xlane.f32.xlu0 %v903
    %v905 = vpop.xlane.xlu0 %904
    %v906 = vsel %vm204, %v901, -inf
    %907 = vmax.xlane.f32.xlu0 %v906
    %v908 = vpop.xlane.xlu0 %907
    %v909 = vsub.f32 %v898, %v905
    %v910 = vsub.f32 %v901, %v908
    %v911 = vmul.f32 %v909, 1.442695
    %v912 = vpow.pop %v911
    %v913 = vmul.f32 %v910, 1.442695
    %v914 = vpow.pop %v913
    %v915 = vsel %vm204, %v912, 0.0
    %916 = vadd.xlane.f32.xlu0 %v915
    %v917 = vpop.xlane.xlu0 %916
    %v918 = vsel %vm204, %v914, 0.0
    %919 = vadd.xlane.f32.xlu0 %v918
    %v920 = vpop.xlane.xlu0 %919
    %v921 = vrcp.pop %v917
    %v922 = vmul.f32 %v917, %v921
    %v923 = vsub.f32 1.0, %v922
    %v924 = vmul.f32 %v921, %v923
    %v925 = vadd.f32 %v921, %v924
    %vm926 = vweird.f32 %v917
    %vm927 = vweird.f32 %v921
    %vm928 = vmor %vm926, %vm927
    %v929 = vsel %vm928, %v921, %v925
    %v930 = vand.u32 2147483647, %v917
    %vm931 = vcmp.eq.f32.partialorder %v930, 8.507059e+37
    %v932 = vand.u32 %v917, 2147483648
    %v933 = vor.u32 1.1754944e-38, %v932
    %v934 = vsel %vm931, %v933, %v929
    %v935 = vmul.f32 %v912, %v934
    %v936 = vrcp.pop %v920
    %v937 = vmul.f32 %v920, %v936
    %v938 = vsub.f32 1.0, %v937
    %v939 = vmul.f32 %v936, %v938
    %v940 = vadd.f32 %v936, %v939
    %vm941 = vweird.f32 %v920
    %vm942 = vweird.f32 %v936
    %vm943 = vmor %vm941, %vm942
    %v944 = vsel %vm943, %v936, %v940
    %v945 = vand.u32 2147483647, %v920
    %vm946 = vcmp.eq.f32.partialorder %v945, 8.507059e+37
    %v947 = vand.u32 %v920, 2147483648
    %v948 = vor.u32 1.1754944e-38, %v947
    %v949 = vsel %vm946, %v948, %v944
    %v950 = vmul.f32 %v914, %v949
    %v952 = vsel %vm204, %v935, 0
    %v955 = vsel %vm204, %v950, 0
    %957 = vmatpush.msra.mxu0 0.0
    %958 = vmatpush.msra.mxu0 0.0
    %959 = vmatpush.msra.mxu0 0.0
    %960 = vmatpush.msra.mxu0 0.0
    %961 = vmatpush.msra.mxu0 0.0
    %962 = vmatpush.msra.mxu0 0.0
    %963 = vmatpush.msra.mxu0 0.0
    %964 = vmatpush.msra.mxu0 0.0
    %965 = vmatpush.msra.mxu0 0.0
    %966 = vmatpush.msra.mxu0 0.0
    %967 = vmatpush.msra.mxu0 0.0
    %968 = vmatpush.msra.mxu0 0.0
    %969 = vmatpush.msra.mxu0 0.0
    %970 = vmatpush.msra.mxu0 0.0
    %971 = vmatpush.msra.mxu0 %v866
    %972 = vmatpush.msra.mxu0 %v863
    %973 = vmatmul.f32.gmra.mxu0 %v952
    %v974 = vpop.f32.mrf.mxu0
    %v975 = vadd.f32 0.0, %v974
    %976 = vmatmul.f32.gmra.mxu0 %v955
    %v977 = vpop.f32.mrf.mxu0
    %v978 = vadd.f32 0.0, %v977
    %979 = vdwg.mxu0
    %v980 = vld [vmem:[%s3 + $0x18] sm:$0xff]
    %v982 = vsel %vm168, %v975, 0
    %v985 = vsel %vm168, %v978, 0
    %987 = vmatpush.msra.mxu0 0.0
    %988 = vmatpush.msra.mxu0 0.0
    %989 = vmatpush.msra.mxu0 0.0
    %990 = vmatpush.msra.mxu0 0.0
    %991 = vmatpush.msra.mxu0 0.0
    %992 = vmatpush.msra.mxu0 0.0
    %993 = vmatpush.msra.mxu0 0.0
    %994 = vmatpush.msra.mxu0 0.0
    %995 = vmatpush.msra.mxu0 0.0
    %996 = vmatpush.msra.mxu0 0.0
    %997 = vmatpush.msra.mxu0 0.0
    %998 = vmatpush.msra.mxu0 0.0
    %999 = vmatpush.msra.mxu0 0.0
    %1000 = vmatpush.msra.mxu0 0.0
    %1001 = vmatpush.msra.mxu0 0.0
    %1002 = vmatpush.msra.mxu0 %v980
    %1003 = vmatmul.f32.gmra.mxu0 %v982
    %v1004 = vpop.f32.mrf.mxu0
    %v1005 = vadd.f32 0.0, %v1004
    %1006 = vmatmul.f32.gmra.mxu0 %v985
    %v1007 = vpop.f32.mrf.mxu0
    %v1008 = vadd.f32 0.0, %v1007
    %1009 = vdwg.mxu0
    %v1010 = vadd.f32 %v776, %v1005
    %v1011 = vadd.f32 %v777, %v1008
    %v1012 = vld [vmem:[%s3 + $0x8c] sm:$0x1]
    %v1013 = vperm.slane %v1012, 0
    %v1014 = vadd.f32 %v1010, %v1013
    %v1015 = vadd.f32 %v1011, %v1013
    %v1016 = vadd.f32 %v18, %v1014
    %v1017 = vadd.f32 %v19, %v1015
    %v1018 = vld [vmem:[%s3 + $0x8d] sm:$0x1]
    %v1019 = vld [vmem:[%s3 + $0x8e] sm:$0x1]
    %v1020 = vsel %vm90, %v1016, 0.0
    %1021 = vadd.xlane.f32.xlu0 %v1020
    %v1022 = vpop.xlane.xlu0 %1021
    %v1023 = vsel %vm90, %v1017, 0.0
    %1024 = vadd.xlane.f32.xlu0 %v1023
    %v1025 = vpop.xlane.xlu0 %1024
    %v1026 = vrcp.pop 32.0
    %v1027 = vmul.f32 32.0, %v1026
    %v1028 = vsub.f32 1.0, %v1027
    %v1029 = vmul.f32 %v1026, %v1028
    %v1030 = vadd.f32 %v1026, %v1029
    %vm1031 = vweird.f32 %v1026
    %v1032 = vsel %vm1031, %v1026, %v1030
    %v1033 = vmul.f32 %v1022, %v1032
    %v1034 = vmul.f32 %v1025, %v1032
    %v1035 = vsub.f32 %v1016, %v1033
    %v1036 = vsub.f32 %v1017, %v1034
    %v1037 = vmul.f32 %v1035, %v1035
    %v1038 = vmul.f32 %v1036, %v1036
    %v1039 = vsel %vm90, %v1037, 0.0
    %1040 = vadd.xlane.f32.xlu0 %v1039
    %v1041 = vpop.xlane.xlu0 %1040
    %v1042 = vsel %vm90, %v1038, 0.0
    %1043 = vadd.xlane.f32.xlu0 %v1042
    %v1044 = vpop.xlane.xlu0 %1043
    %v1045 = vmul.f32 %v1041, %v1032
    %v1046 = vmul.f32 %v1044, %v1032
    %v1047 = vadd.f32 %v1045, 1e-05
    %v1048 = vadd.f32 %v1046, 1e-05
    %v1049 = vrsqrt.pop %v1047
    %v1050 = vmul.f32 %v1049, %v1047
    %v1051 = vmul.f32 %v1050, %v1049
    %v1052 = vmul.f32 0.5, %v1051
    %v1053 = vsub.f32 1.5, %v1052
    %v1054 = vmul.f32 %v1049, %v1053
    %vm1055 = vweird.f32 %v1047
    %vm1056 = vweird.f32 %v1049
    %vm1057 = vmor %vm1055, %vm1056
    %v1058 = vsel %vm1057, %v1049, %v1054
    %v1059 = vrsqrt.pop %v1048
    %v1060 = vmul.f32 %v1059, %v1048
    %v1061 = vmul.f32 %v1060, %v1059
    %v1062 = vmul.f32 0.5, %v1061
    %v1063 = vsub.f32 1.5, %v1062
    %v1064 = vmul.f32 %v1059, %v1063
    %vm1065 = vweird.f32 %v1048
    %vm1066 = vweird.f32 %v1059
    %vm1067 = vmor %vm1065, %vm1066
    %v1068 = vsel %vm1067, %v1059, %v1064
    %v1069 = vmul.f32 %v1035, %v1058
    %v1070 = vmul.f32 %v1036, %v1068
    %v1071 = vperm.slane %v1018, 0
    %v1072 = vmul.f32 %v1069, %v1071
    %v1073 = vmul.f32 %v1070, %v1071
    %v1074 = vperm.slane %v1019, 0
    %v1075 = vadd.f32 %v1072, %v1074
    %v1076 = vadd.f32 %v1073, %v1074
    %v1077 = vld [vmem:[%s3 + $0x20] sm:$0xff]
    %v1078 = vld [vmem:[%s3 + $0x28] sm:$0xff]
    %v1079 = vld [vmem:[%s3 + $0x30] sm:$0xff]
    %v1080 = vld [vmem:[%s3 + $0x38] sm:$0xff]
    %v1081 = vld [vmem:[%s3 + $0x8f] sm:$0x1]
    %v1082 = vperm.slane %v1081, 0
    %v1084 = vsel %vm90, %v1075, 0
    %v1087 = vsel %vm90, %v1076, 0
    %1089 = vmatpush.msra.mxu0 0.0
    %1090 = vmatpush.msra.mxu0 0.0
    %1091 = vmatpush.msra.mxu0 0.0
    %1092 = vmatpush.msra.mxu0 0.0
    %1093 = vmatpush.msra.mxu0 0.0
    %1094 = vmatpush.msra.mxu0 0.0
    %1095 = vmatpush.msra.mxu0 0.0
    %1096 = vmatpush.msra.mxu0 0.0
    %1097 = vmatpush.msra.mxu0 0.0
    %1098 = vmatpush.msra.mxu0 0.0
    %1099 = vmatpush.msra.mxu0 0.0
    %1100 = vmatpush.msra.mxu0 0.0
    %1101 = vmatpush.msra.mxu0 %v1080
    %1102 = vmatpush.msra.mxu0 %v1079
    %1103 = vmatpush.msra.mxu0 %v1078
    %1104 = vmatpush.msra.mxu0 %v1077
    %1105 = vmatmul.f32.gmra.mxu0 %v1084
    %v1106 = vpop.f32.mrf.mxu0
    %v1107 = vadd.f32 %v1082, %v1106
    %1108 = vmatmul.f32.gmra.mxu0 %v1087
    %v1109 = vpop.f32.mrf.mxu0
    %v1110 = vadd.f32 %v1082, %v1109
    %1111 = vdwg.mxu0
    %v1112 = vmax.f32 %v1107, 0.0
    %v1113 = vmax.f32 %v1110, 0.0
    %v1114 = vld [vmem:[%s3 + $0x40] sm:$0xff]
    %v1115 = vld [vmem:[%s3 + $0x48] sm:$0xff]
    %v1116 = vld [vmem:[%s3 + $0x50] sm:$0xff]
    %v1117 = vld [vmem:[%s3 + $0x58] sm:$0xff]
    %v1118 = vld [vmem:[%s3 + $0x60] sm:$0xff]
    %v1119 = vld [vmem:[%s3 + $0x68] sm:$0xff]
    %v1120 = vld [vmem:[%s3 + $0x70] sm:$0xff]
    %v1121 = vld [vmem:[%s3 + $0x78] sm:$0xff]
    %v1122 = vld [vmem:[%s3 + $0x90] sm:$0x1]
    %v1123 = vperm.slane %v1122, 0
    %vm1124 = vcmask 523264
    %v1126 = vsel %vm1124, %v1112, 0
    %v1129 = vsel %vm1124, %v1113, 0
    %1131 = vmatpush.msra.mxu0 0.0
    %1132 = vmatpush.msra.mxu0 0.0
    %1133 = vmatpush.msra.mxu0 0.0
    %1134 = vmatpush.msra.mxu0 0.0
    %1135 = vmatpush.msra.mxu0 0.0
    %1136 = vmatpush.msra.mxu0 0.0
    %1137 = vmatpush.msra.mxu0 0.0
    %1138 = vmatpush.msra.mxu0 0.0
    %1139 = vmatpush.msra.mxu0 %v1121
    %1140 = vmatpush.msra.mxu0 %v1120
    %1141 = vmatpush.msra.mxu0 %v1119
    %1142 = vmatpush.msra.mxu0 %v1118
    %1143 = vmatpush.msra.mxu0 %v1117
    %1144 = vmatpush.msra.mxu0 %v1116
    %1145 = vmatpush.msra.mxu0 %v1115
    %1146 = vmatpush.msra.mxu0 %v1114
    %1147 = vmatmul.f32.gmra.mxu0 %v1126
    %v1148 = vpop.f32.mrf.mxu0
    %v1149 = vadd.f32 %v1123, %v1148
    %1150 = vmatmul.f32.gmra.mxu0 %v1129
    %v1151 = vpop.f32.mrf.mxu0
    %v1152 = vadd.f32 %v1123, %v1151
    %1153 = vdwg.mxu0
    %v1154 = vadd.f32 %v1075, %v1149
    %v1155 = vadd.f32 %v1076, %v1152
    %v1156 = vld [vmem:[%s3 + $0x91] sm:$0x1]
    %v1157 = vld [vmem:[%s3 + $0x92] sm:$0x1]
    %v1158 = vsel %vm90, %v1154, 0.0
    %1159 = vadd.xlane.f32.xlu0 %v1158
    %v1160 = vpop.xlane.xlu0 %1159
    %v1161 = vsel %vm90, %v1155, 0.0
    %1162 = vadd.xlane.f32.xlu0 %v1161
    %v1163 = vpop.xlane.xlu0 %1162
    %v1164 = vmul.f32 %v1160, %v1032
    %v1165 = vmul.f32 %v1163, %v1032
    %v1166 = vsub.f32 %v1154, %v1164
    %v1167 = vsub.f32 %v1155, %v1165
    %v1168 = vmul.f32 %v1166, %v1166
    %v1169 = vmul.f32 %v1167, %v1167
    %v1170 = vsel %vm90, %v1168, 0.0
    %1171 = vadd.xlane.f32.xlu0 %v1170
    %v1172 = vpop.xlane.xlu0 %1171
    %v1173 = vsel %vm90, %v1169, 0.0
    %1174 = vadd.xlane.f32.xlu0 %v1173
    %v1175 = vpop.xlane.xlu0 %1174
    %v1176 = vmul.f32 %v1172, %v1032
    %v1177 = vmul.f32 %v1175, %v1032
    %v1178 = vadd.f32 %v1176, 1e-05
    %v1179 = vadd.f32 %v1177, 1e-05
    %v1180 = vrsqrt.pop %v1178
    %v1181 = vmul.f32 %v1180, %v1178
    %v1182 = vmul.f32 %v1181, %v1180
    %v1183 = vmul.f32 0.5, %v1182
    %v1184 = vsub.f32 1.5, %v1183
    %v1185 = vmul.f32 %v1180, %v1184
    %vm1186 = vweird.f32 %v1178
    %vm1187 = vweird.f32 %v1180
    %vm1188 = vmor %vm1186, %vm1187
    %v1189 = vsel %vm1188, %v1180, %v1185
    %v1190 = vrsqrt.pop %v1179
    %v1191 = vmul.f32 %v1190, %v1179
    %v1192 = vmul.f32 %v1191, %v1190
    %v1193 = vmul.f32 0.5, %v1192
    %v1194 = vsub.f32 1.5, %v1193
    %v1195 = vmul.f32 %v1190, %v1194
    %vm1196 = vweird.f32 %v1179
    %vm1197 = vweird.f32 %v1190
    %vm1198 = vmor %vm1196, %vm1197
    %v1199 = vsel %vm1198, %v1190, %v1195
    %v1200 = vmul.f32 %v1166, %v1189
    %v1201 = vmul.f32 %v1167, %v1199
    %v1202 = vperm.slane %v1156, 0
    %v1203 = vmul.f32 %v1200, %v1202
    %v1204 = vmul.f32 %v1201, %v1202
    %v1205 = vperm.slane %v1157, 0
    %v1206 = vadd.f32 %v1203, %v1205
    %v1207 = vadd.f32 %v1204, %v1205
    %1208 = vst.msk [vmem:[#allocation2] sm:$0xff] %vm90, %v1206
    %1209 = vst.msk [vmem:[#allocation2 + $0x8] sm:$0xff] %vm90, %v1207
    // Predicated region
    $region18: #{transformer_encoder_layer.1} parent=1 // pred_check
      _
    $region19: #{transformer_encoder_layer.1} parent=1 // pred_check_branch
      %1211 = sbr.rel (0) target = $region21
    $region20: #{transformer_encoder_layer.1} parent=1 // pred_region
      %1213 = vsyncadd [#allocation3], 0
      %s1214 = sshll.u32 [#allocation2], 4
      %s1215 = int_to_ptr.vmem [resolvable:$true] %s1214
      %s1216 = sshll.u32 %s4, 4
      %s1217 = int_to_ptr.hbm [resolvable:$true] %s1216
      %1222 = dma.vmem_to_hbm [thread:$0]  %s1215, 256, %s1217, [#allocation3], 128, 128, 8
    $region21: #{transformer_encoder_layer.1} parent=1 // pred_fallthru
      _
    // Predicated region
    $region22: #{transformer_encoder_layer.1} parent=1 // pred_check
      _
    $region23: #{transformer_encoder_layer.1} parent=1 // pred_check_branch
      %1224 = sbr.rel (0) target = $region25
    $region24: #{transformer_encoder_layer.1} parent=1 // pred_region
      %1226 = dma.done [#allocation3], 256
    $region25: #{transformer_encoder_layer.1} parent=1 // pred_fallthru
      _
    %1227 = vsyncpa [#allocation3], 1

</llo_original>
